<compile_context>
chip_gen: v6e
topology: v6e:2x2x1
jax: 0.10.0
libtpu: 0.0.40
codegen_flags: <defaults>
</compile_context>

<pallas_src>
import jax
import jax.numpy as jnp
from jax.experimental import pallas as pl
from jax.experimental.pallas import tpu as pltpu

EPS = 1e-5  # PyTorch BatchNorm1d default eps


def _bn(z):
    """BatchNorm1d(affine=False), training mode (biased per-batch variance).

    Stats are computed/kept in f32 (cancellation safety), normalized output is
    emitted in bf16 so the following MXU dot needs no extra cast pass.
    var = E[x^2] - mean^2 with a clamp at 0; stats path is f32 end-to-end.
    """
    zf = z.astype(jnp.float32)
    mean = jnp.mean(zf, axis=0, keepdims=True)
    mean_sq = jnp.mean(zf * zf, axis=0, keepdims=True)
    var = jnp.maximum(mean_sq - mean * mean, 0.0)
    scale = jax.lax.rsqrt(var + EPS)
    return ((zf - mean) * scale).astype(jnp.bfloat16)


def make_cdnet_kernel(num_cross, num_deep):
    """Builds the kernel body for a fixed (num_cross, num_deep) config."""

    def kernel(*refs):
        # refs layout:
        #   x_ref                 (B, F)              bf16 concatenated input
        #   cw_ref                (F, num_cross + 1)  bf16 packed cross weight
        #                                             columns; last column is
        #                                             the cross half of the
        #                                             output head
        #   W_i  i < num_deep     (d_in, d_out)       bf16 deep linear weights
        #   wd_ref                (D_last, 1)         bf16 head weight (deep)
        #   bout_ref              (1,)                f32 in SMEM
        #   out_ref               (B, 1)              f32
        idx = 0
        x_ref = refs[idx]; idx += 1
        cw_ref = refs[idx]; idx += 1
        deep_w_refs = refs[idx:idx + num_deep]; idx += num_deep
        wd_ref = refs[idx]; idx += 1
        bout_ref = refs[idx]; idx += 1
        out_ref = refs[idx]

        # ---- input batchnorm (CDNet.batchnorm) ----
        x0 = _bn(x_ref[...])                                   # (B, F) bf16

        # ---- CrossNet ----
        # output_new[b,:] = x0[b,:] * <output[b,:], w_i> + output[b,:]
        # (the bmm outer-product followed by matmul with w collapses to a row
        #  dot -> runs on the MXU via a (F,1) bf16 column; the +b_i bias is
        #  dropped: it cancels under the following affine-free BatchNorm.)
        out = x0
        for i in range(num_cross):
            dot = jnp.dot(out, cw_ref[:, i:i + 1],
                          preferred_element_type=jnp.float32)  # (B, 1) f32
            # bf16 * f32 / + bf16 promote to f32: combine math is f32 with the
            # casts fused into the arithmetic (no separate cast pass).
            out = _bn(x0 * dot + out)

        # ---- DeepNet: Linear -> BatchNorm1d -> ReLU per layer ----
        # (Linear bias dropped: cancels under the affine-free BatchNorm.)
        h = x0
        for li in range(num_deep):
            lin = jnp.dot(h, deep_w_refs[li][...],
                          preferred_element_type=jnp.float32)  # (B, d_out) f32
            h = jnp.maximum(_bn(lin), 0.0)                     # bf16

        # ---- output head: Linear(concat(cross, deep)) -> sigmoid ----
        # concat avoided via the pre-split head weight (cross part is the last
        # column of the packed cross-weight matrix).
        logit = (jnp.dot(out, cw_ref[:, num_cross:num_cross + 1],
                         preferred_element_type=jnp.float32)
                 + jnp.dot(h, wd_ref[...],
                           preferred_element_type=jnp.float32)
                 + bout_ref[0])
        out_ref[...] = jax.nn.sigmoid(logit)

    return kernel


def _vmem_limit_bytes():
    """Per-generation VMEM budget: ~85% of physical, capped at 100 MiB."""
    try:
        cap = int(pltpu.get_tpu_info().vmem_capacity_bytes)
    except Exception:
        cap = 64 * 1024 * 1024  # conservative fallback (v7x-sized)
    return min(int(cap * 0.85), 100 * 1024 * 1024)


def cdnet_forward(params, sparse_feature, dense_feature, embedding_index):
    # ---- embedding lookups + mean + concat (plain-JAX glue; gather) ----
    feats = []
    for i, idx in enumerate(embedding_index):
        if isinstance(idx, list):
            ids = sparse_feature[:, jnp.array(idx, dtype=jnp.int32)]   # (B, k)
        else:
            ids = sparse_feature[:, idx][:, None]                      # (B, 1)
        emb = jnp.take(params["emb"][i], ids, axis=0)                  # (B, k, d)
        feats.append(jnp.mean(emb, axis=1))
    input_feature = jnp.concatenate(
        feats + [dense_feature], axis=1).astype(jnp.bfloat16)          # (B, F) bf16

    B, F = input_feature.shape
    num_cross = params["cross_w"].shape[0]
    num_deep = len(params["deep_w"])

    kernel = make_cdnet_kernel(num_cross, num_deep)

    # ---- argument packing (weights pre-reshaped / pre-cast host-side) ----
    # Packed cross columns: [w_0 | w_1 | ... | w_{nc-1} | head_cross]  (F, nc+1)
    cw_pack = jnp.concatenate(
        [params["cross_w"].T, params["out_w"][:F]], axis=1).astype(jnp.bfloat16)

    args = [input_feature, cw_pack]
    for W in params["deep_w"]:
        args.append(W.astype(jnp.bfloat16))
    args.append(params["out_w"][F:].astype(jnp.bfloat16))       # (D_last, 1)
    args.append(params["out_b"].reshape(1).astype(jnp.float32))  # SMEM scalar
    # cross_b / deep_b intentionally NOT shipped: they cancel under the
    # affine-free, training-mode BatchNorm that immediately follows them.

    vmem = pl.BlockSpec(memory_space=pltpu.MemorySpace.VMEM)
    smem = pl.BlockSpec(memory_space=pltpu.MemorySpace.SMEM)
    in_specs = [vmem] * (len(args) - 1) + [smem]

    pctr = pl.pallas_call(
        kernel,
        out_shape=jax.ShapeDtypeStruct((B, 1), jnp.float32),
        in_specs=in_specs,
        out_specs=vmem,
        compiler_params=pltpu.CompilerParams(
            vmem_limit_bytes=_vmem_limit_bytes()),
    )(*args)
    return pctr[:, 0]                                                  # (B,)


def init_params(key, embedding_size, dense_feature_num, cross_layer_num,
                deep_layer):
    embedding_num = [int(6 * (s ** 0.25)) for s in embedding_size]
    input_feature_num = int(sum(embedding_num) + dense_feature_num)

    keys = jax.random.split(key, 16)
    emb = []
    for i, (sz, d) in enumerate(zip(embedding_size, embedding_num)):
        # nn.Embedding(sz * 5, d), default N(0, 1) init
        emb.append(jax.random.normal(keys[i], (sz * 5, d), jnp.float32))

    num_cross = cross_layer_num + 1
    cross_w = jax.random.normal(keys[8], (num_cross, input_feature_num),
                                jnp.float32)
    # cross_b / deep biases still part of the module definition; the kernel
    # skips them because BatchNorm1d(affine=False) training-mode cancels them.
    cross_b = jax.random.normal(keys[9], (num_cross, input_feature_num),
                                jnp.float32)

    dims = [input_feature_num] + list(deep_layer)
    kk = jax.random.split(keys[10], 2 * len(deep_layer))
    deep_w, deep_b = [], []
    for i in range(len(deep_layer)):
        bound = 1.0 / (dims[i] ** 0.5)
        deep_w.append(jax.random.uniform(kk[2 * i], (dims[i], dims[i + 1]),
                                         jnp.float32, -bound, bound))
        deep_b.append(jax.random.uniform(kk[2 * i + 1], (dims[i + 1],),
                                         jnp.float32, -bound, bound))

    last = input_feature_num + deep_layer[-1]
    bound = 1.0 / (last ** 0.5)
    out_w = jax.random.uniform(keys[11], (last, 1), jnp.float32, -bound, bound)
    out_b = jax.random.uniform(keys[12], (1,), jnp.float32, -bound, bound)

    params = {"emb": emb, "cross_w": cross_w, "cross_b": cross_b,
              "deep_w": deep_w, "deep_b": deep_b,
              "out_w": out_w, "out_b": out_b}
    return params, input_feature_num


if __name__ == "__main__":
    # Small config consistent with CDNet.__init__
    embedding_index = [0, 1, [2, 3]]      # 4 sparse columns, 3 embedding tables
    embedding_size = [10, 20, 15]
    dense_feature_num = 7
    cross_layer_num = 2                   # -> 3 cross layers internally
    deep_layer = [32, 16]
    B = 128                               # whole batch in one kernel call

    key = jax.random.PRNGKey(0)
    pkey, skey, dkey = jax.random.split(key, 3)
    params, F = init_params(pkey, embedding_size, dense_feature_num,
                            cross_layer_num, deep_layer)

    # sparse ids kept within the smallest table (10*5 = 50 rows) so every
    # column is a valid index into its table.
    sparse_feature = jax.random.randint(skey, (B, 4), 0, 50, dtype=jnp.int32)
    dense_feature = jax.random.normal(dkey, (B, dense_feature_num),
                                      jnp.float32)

    pctr = cdnet_forward(params, sparse_feature, dense_feature,
                         embedding_index)
    pctr = jax.block_until_ready(pctr)
    assert pctr.shape == (B,)
    assert bool(jnp.all(jnp.isfinite(pctr)))
    assert bool(jnp.all((pctr >= 0.0) & (pctr <= 1.0)))
    print("KERNEL_OK")
</pallas_src>

<mosaic_0001>
module attributes {stable_mosaic.version = 11 : i64} {
  func.func @kernel(%arg0: memref<128x40xbf16, #tpu.memory_space<vmem>>, %arg1: memref<40x4xbf16, #tpu.memory_space<vmem>>, %arg2: memref<40x32xbf16, #tpu.memory_space<vmem>>, %arg3: memref<32x16xbf16, #tpu.memory_space<vmem>>, %arg4: memref<16x1xbf16, #tpu.memory_space<vmem>>, %arg5: memref<1xf32, #tpu.memory_space<smem>>, %arg6: memref<128x1xf32, #tpu.memory_space<vmem>>) attributes {dimension_semantics = [], scalar_prefetch = 0 : i64, scratch_operands = 0 : i64, tpu.core_type = #tpu.core_type<tc>} {
    %c0 = arith.constant 0 : index
    %c0_0 = arith.constant 0 : index
    %0 = vector.load %arg0[%c0, %c0_0] : memref<128x40xbf16, #tpu.memory_space<vmem>>, vector<128x40xbf16>
    %1 = arith.extf %0 : vector<128x40xbf16> to vector<128x40xf32>
    %cst = arith.constant dense<0.000000e+00> : vector<40xf32>
    %2 = vector.multi_reduction <add>, %1, %cst [0] : vector<128x40xf32> to vector<40xf32>
    %3 = vector.shape_cast %2 : vector<40xf32> to vector<1x40xf32>
    %cst_1 = arith.constant 1.280000e+02 : f32
    %4 = vector.broadcast %cst_1 : f32 to vector<1x40xf32>
    %5 = arith.divf %3, %4 : vector<1x40xf32>
    %6 = arith.mulf %1, %1 : vector<128x40xf32>
    %cst_2 = arith.constant dense<0.000000e+00> : vector<40xf32>
    %7 = vector.multi_reduction <add>, %6, %cst_2 [0] : vector<128x40xf32> to vector<40xf32>
    %8 = vector.shape_cast %7 : vector<40xf32> to vector<1x40xf32>
    %cst_3 = arith.constant 1.280000e+02 : f32
    %9 = vector.broadcast %cst_3 : f32 to vector<1x40xf32>
    %10 = arith.divf %8, %9 : vector<1x40xf32>
    %11 = arith.mulf %5, %5 : vector<1x40xf32>
    %12 = arith.subf %10, %11 : vector<1x40xf32>
    %cst_4 = arith.constant 0.000000e+00 : f32
    %13 = vector.broadcast %cst_4 : f32 to vector<1x40xf32>
    %14 = arith.maximumf %12, %13 : vector<1x40xf32>
    %cst_5 = arith.constant 9.99999974E-6 : f32
    %15 = vector.broadcast %cst_5 : f32 to vector<1x40xf32>
    %16 = arith.addf %14, %15 : vector<1x40xf32>
    %17 = math.rsqrt %16 : vector<1x40xf32>
    %18 = vector.broadcast %5 : vector<1x40xf32> to vector<128x40xf32>
    %19 = arith.subf %1, %18 : vector<128x40xf32>
    %20 = vector.broadcast %17 : vector<1x40xf32> to vector<128x40xf32>
    %21 = arith.mulf %19, %20 : vector<128x40xf32>
    %22 = arith.truncf %21 : vector<128x40xf32> to vector<128x40xbf16>
    %c0_6 = arith.constant 0 : index
    %c0_7 = arith.constant 0 : index
    %23 = vector.load %arg1[%c0_6, %c0_7] : memref<40x4xbf16, #tpu.memory_space<vmem>>, vector<40x1xbf16>
    %cst_8 = arith.constant dense<0.000000e+00> : vector<128x1xf32>
    %24 = tpu.matmul %22, %23, %cst_8 {dimension_numbers = #tpu.dot_dimension_numbers<[1], [0], [0], [1], [0, 0, 1, 1], [], []>} : vector<128x40xbf16>, vector<40x1xbf16>, vector<128x1xf32> -> vector<128x1xf32>
    %25 = arith.extf %22 : vector<128x40xbf16> to vector<128x40xf32>
    %26 = vector.broadcast %24 : vector<128x1xf32> to vector<128x40xf32>
    %27 = arith.mulf %25, %26 : vector<128x40xf32>
    %28 = arith.extf %22 : vector<128x40xbf16> to vector<128x40xf32>
    %29 = arith.addf %27, %28 : vector<128x40xf32>
    %cst_9 = arith.constant dense<0.000000e+00> : vector<40xf32>
    %30 = vector.multi_reduction <add>, %29, %cst_9 [0] : vector<128x40xf32> to vector<40xf32>
    %31 = vector.shape_cast %30 : vector<40xf32> to vector<1x40xf32>
    %cst_10 = arith.constant 1.280000e+02 : f32
    %32 = vector.broadcast %cst_10 : f32 to vector<1x40xf32>
    %33 = arith.divf %31, %32 : vector<1x40xf32>
    %34 = arith.mulf %29, %29 : vector<128x40xf32>
    %cst_11 = arith.constant dense<0.000000e+00> : vector<40xf32>
    %35 = vector.multi_reduction <add>, %34, %cst_11 [0] : vector<128x40xf32> to vector<40xf32>
    %36 = vector.shape_cast %35 : vector<40xf32> to vector<1x40xf32>
    %cst_12 = arith.constant 1.280000e+02 : f32
    %37 = vector.broadcast %cst_12 : f32 to vector<1x40xf32>
    %38 = arith.divf %36, %37 : vector<1x40xf32>
    %39 = arith.mulf %33, %33 : vector<1x40xf32>
    %40 = arith.subf %38, %39 : vector<1x40xf32>
    %cst_13 = arith.constant 0.000000e+00 : f32
    %41 = vector.broadcast %cst_13 : f32 to vector<1x40xf32>
    %42 = arith.maximumf %40, %41 : vector<1x40xf32>
    %cst_14 = arith.constant 9.99999974E-6 : f32
    %43 = vector.broadcast %cst_14 : f32 to vector<1x40xf32>
    %44 = arith.addf %42, %43 : vector<1x40xf32>
    %45 = math.rsqrt %44 : vector<1x40xf32>
    %46 = vector.broadcast %33 : vector<1x40xf32> to vector<128x40xf32>
    %47 = arith.subf %29, %46 : vector<128x40xf32>
    %48 = vector.broadcast %45 : vector<1x40xf32> to vector<128x40xf32>
    %49 = arith.mulf %47, %48 : vector<128x40xf32>
    %50 = arith.truncf %49 : vector<128x40xf32> to vector<128x40xbf16>
    %c0_15 = arith.constant 0 : index
    %c1 = arith.constant 1 : index
    %51 = vector.load %arg1[%c0_15, %c1] : memref<40x4xbf16, #tpu.memory_space<vmem>>, vector<40x1xbf16>
    %cst_16 = arith.constant dense<0.000000e+00> : vector<128x1xf32>
    %52 = tpu.matmul %50, %51, %cst_16 {dimension_numbers = #tpu.dot_dimension_numbers<[1], [0], [0], [1], [0, 0, 1, 1], [], []>} : vector<128x40xbf16>, vector<40x1xbf16>, vector<128x1xf32> -> vector<128x1xf32>
    %53 = arith.extf %22 : vector<128x40xbf16> to vector<128x40xf32>
    %54 = vector.broadcast %52 : vector<128x1xf32> to vector<128x40xf32>
    %55 = arith.mulf %53, %54 : vector<128x40xf32>
    %56 = arith.extf %50 : vector<128x40xbf16> to vector<128x40xf32>
    %57 = arith.addf %55, %56 : vector<128x40xf32>
    %cst_17 = arith.constant dense<0.000000e+00> : vector<40xf32>
    %58 = vector.multi_reduction <add>, %57, %cst_17 [0] : vector<128x40xf32> to vector<40xf32>
    %59 = vector.shape_cast %58 : vector<40xf32> to vector<1x40xf32>
    %cst_18 = arith.constant 1.280000e+02 : f32
    %60 = vector.broadcast %cst_18 : f32 to vector<1x40xf32>
    %61 = arith.divf %59, %60 : vector<1x40xf32>
    %62 = arith.mulf %57, %57 : vector<128x40xf32>
    %cst_19 = arith.constant dense<0.000000e+00> : vector<40xf32>
    %63 = vector.multi_reduction <add>, %62, %cst_19 [0] : vector<128x40xf32> to vector<40xf32>
    %64 = vector.shape_cast %63 : vector<40xf32> to vector<1x40xf32>
    %cst_20 = arith.constant 1.280000e+02 : f32
    %65 = vector.broadcast %cst_20 : f32 to vector<1x40xf32>
    %66 = arith.divf %64, %65 : vector<1x40xf32>
    %67 = arith.mulf %61, %61 : vector<1x40xf32>
    %68 = arith.subf %66, %67 : vector<1x40xf32>
    %cst_21 = arith.constant 0.000000e+00 : f32
    %69 = vector.broadcast %cst_21 : f32 to vector<1x40xf32>
    %70 = arith.maximumf %68, %69 : vector<1x40xf32>
    %cst_22 = arith.constant 9.99999974E-6 : f32
    %71 = vector.broadcast %cst_22 : f32 to vector<1x40xf32>
    %72 = arith.addf %70, %71 : vector<1x40xf32>
    %73 = math.rsqrt %72 : vector<1x40xf32>
    %74 = vector.broadcast %61 : vector<1x40xf32> to vector<128x40xf32>
    %75 = arith.subf %57, %74 : vector<128x40xf32>
    %76 = vector.broadcast %73 : vector<1x40xf32> to vector<128x40xf32>
    %77 = arith.mulf %75, %76 : vector<128x40xf32>
    %78 = arith.truncf %77 : vector<128x40xf32> to vector<128x40xbf16>
    %c0_23 = arith.constant 0 : index
    %c2 = arith.constant 2 : index
    %79 = vector.load %arg1[%c0_23, %c2] : memref<40x4xbf16, #tpu.memory_space<vmem>>, vector<40x1xbf16>
    %cst_24 = arith.constant dense<0.000000e+00> : vector<128x1xf32>
    %80 = tpu.matmul %78, %79, %cst_24 {dimension_numbers = #tpu.dot_dimension_numbers<[1], [0], [0], [1], [0, 0, 1, 1], [], []>} : vector<128x40xbf16>, vector<40x1xbf16>, vector<128x1xf32> -> vector<128x1xf32>
    %81 = arith.extf %22 : vector<128x40xbf16> to vector<128x40xf32>
    %82 = vector.broadcast %80 : vector<128x1xf32> to vector<128x40xf32>
    %83 = arith.mulf %81, %82 : vector<128x40xf32>
    %84 = arith.extf %78 : vector<128x40xbf16> to vector<128x40xf32>
    %85 = arith.addf %83, %84 : vector<128x40xf32>
    %cst_25 = arith.constant dense<0.000000e+00> : vector<40xf32>
    %86 = vector.multi_reduction <add>, %85, %cst_25 [0] : vector<128x40xf32> to vector<40xf32>
    %87 = vector.shape_cast %86 : vector<40xf32> to vector<1x40xf32>
    %cst_26 = arith.constant 1.280000e+02 : f32
    %88 = vector.broadcast %cst_26 : f32 to vector<1x40xf32>
    %89 = arith.divf %87, %88 : vector<1x40xf32>
    %90 = arith.mulf %85, %85 : vector<128x40xf32>
    %cst_27 = arith.constant dense<0.000000e+00> : vector<40xf32>
    %91 = vector.multi_reduction <add>, %90, %cst_27 [0] : vector<128x40xf32> to vector<40xf32>
    %92 = vector.shape_cast %91 : vector<40xf32> to vector<1x40xf32>
    %cst_28 = arith.constant 1.280000e+02 : f32
    %93 = vector.broadcast %cst_28 : f32 to vector<1x40xf32>
    %94 = arith.divf %92, %93 : vector<1x40xf32>
    %95 = arith.mulf %89, %89 : vector<1x40xf32>
    %96 = arith.subf %94, %95 : vector<1x40xf32>
    %cst_29 = arith.constant 0.000000e+00 : f32
    %97 = vector.broadcast %cst_29 : f32 to vector<1x40xf32>
    %98 = arith.maximumf %96, %97 : vector<1x40xf32>
    %cst_30 = arith.constant 9.99999974E-6 : f32
    %99 = vector.broadcast %cst_30 : f32 to vector<1x40xf32>
    %100 = arith.addf %98, %99 : vector<1x40xf32>
    %101 = math.rsqrt %100 : vector<1x40xf32>
    %102 = vector.broadcast %89 : vector<1x40xf32> to vector<128x40xf32>
    %103 = arith.subf %85, %102 : vector<128x40xf32>
    %104 = vector.broadcast %101 : vector<1x40xf32> to vector<128x40xf32>
    %105 = arith.mulf %103, %104 : vector<128x40xf32>
    %106 = arith.truncf %105 : vector<128x40xf32> to vector<128x40xbf16>
    %c0_31 = arith.constant 0 : index
    %c0_32 = arith.constant 0 : index
    %107 = vector.load %arg2[%c0_31, %c0_32] : memref<40x32xbf16, #tpu.memory_space<vmem>>, vector<40x32xbf16>
    %cst_33 = arith.constant dense<0.000000e+00> : vector<128x32xf32>
    %108 = tpu.matmul %22, %107, %cst_33 {dimension_numbers = #tpu.dot_dimension_numbers<[1], [0], [0], [1], [0, 0, 1, 1], [], []>} : vector<128x40xbf16>, vector<40x32xbf16>, vector<128x32xf32> -> vector<128x32xf32>
    %cst_34 = arith.constant dense<0.000000e+00> : vector<32xf32>
    %109 = vector.multi_reduction <add>, %108, %cst_34 [0] : vector<128x32xf32> to vector<32xf32>
    %110 = vector.shape_cast %109 : vector<32xf32> to vector<1x32xf32>
    %cst_35 = arith.constant 1.280000e+02 : f32
    %111 = vector.broadcast %cst_35 : f32 to vector<1x32xf32>
    %112 = arith.divf %110, %111 : vector<1x32xf32>
    %113 = arith.mulf %108, %108 : vector<128x32xf32>
    %cst_36 = arith.constant dense<0.000000e+00> : vector<32xf32>
    %114 = vector.multi_reduction <add>, %113, %cst_36 [0] : vector<128x32xf32> to vector<32xf32>
    %115 = vector.shape_cast %114 : vector<32xf32> to vector<1x32xf32>
    %cst_37 = arith.constant 1.280000e+02 : f32
    %116 = vector.broadcast %cst_37 : f32 to vector<1x32xf32>
    %117 = arith.divf %115, %116 : vector<1x32xf32>
    %118 = arith.mulf %112, %112 : vector<1x32xf32>
    %119 = arith.subf %117, %118 : vector<1x32xf32>
    %cst_38 = arith.constant 0.000000e+00 : f32
    %120 = vector.broadcast %cst_38 : f32 to vector<1x32xf32>
    %121 = arith.maximumf %119, %120 : vector<1x32xf32>
    %cst_39 = arith.constant 9.99999974E-6 : f32
    %122 = vector.broadcast %cst_39 : f32 to vector<1x32xf32>
    %123 = arith.addf %121, %122 : vector<1x32xf32>
    %124 = math.rsqrt %123 : vector<1x32xf32>
    %125 = vector.broadcast %112 : vector<1x32xf32> to vector<128x32xf32>
    %126 = arith.subf %108, %125 : vector<128x32xf32>
    %127 = vector.broadcast %124 : vector<1x32xf32> to vector<128x32xf32>
    %128 = arith.mulf %126, %127 : vector<128x32xf32>
    %129 = arith.truncf %128 : vector<128x32xf32> to vector<128x32xbf16>
    %cst_40 = arith.constant 0.000000e+00 : bf16
    %130 = vector.broadcast %cst_40 : bf16 to vector<128x32xbf16>
    %131 = arith.maximumf %129, %130 : vector<128x32xbf16>
    %c0_41 = arith.constant 0 : index
    %c0_42 = arith.constant 0 : index
    %132 = vector.load %arg3[%c0_41, %c0_42] : memref<32x16xbf16, #tpu.memory_space<vmem>>, vector<32x16xbf16>
    %cst_43 = arith.constant dense<0.000000e+00> : vector<128x16xf32>
    %133 = tpu.matmul %131, %132, %cst_43 {dimension_numbers = #tpu.dot_dimension_numbers<[1], [0], [0], [1], [0, 0, 1, 1], [], []>} : vector<128x32xbf16>, vector<32x16xbf16>, vector<128x16xf32> -> vector<128x16xf32>
    %cst_44 = arith.constant dense<0.000000e+00> : vector<16xf32>
    %134 = vector.multi_reduction <add>, %133, %cst_44 [0] : vector<128x16xf32> to vector<16xf32>
    %135 = vector.shape_cast %134 : vector<16xf32> to vector<1x16xf32>
    %cst_45 = arith.constant 1.280000e+02 : f32
    %136 = vector.broadcast %cst_45 : f32 to vector<1x16xf32>
    %137 = arith.divf %135, %136 : vector<1x16xf32>
    %138 = arith.mulf %133, %133 : vector<128x16xf32>
    %cst_46 = arith.constant dense<0.000000e+00> : vector<16xf32>
    %139 = vector.multi_reduction <add>, %138, %cst_46 [0] : vector<128x16xf32> to vector<16xf32>
    %140 = vector.shape_cast %139 : vector<16xf32> to vector<1x16xf32>
    %cst_47 = arith.constant 1.280000e+02 : f32
    %141 = vector.broadcast %cst_47 : f32 to vector<1x16xf32>
    %142 = arith.divf %140, %141 : vector<1x16xf32>
    %143 = arith.mulf %137, %137 : vector<1x16xf32>
    %144 = arith.subf %142, %143 : vector<1x16xf32>
    %cst_48 = arith.constant 0.000000e+00 : f32
    %145 = vector.broadcast %cst_48 : f32 to vector<1x16xf32>
    %146 = arith.maximumf %144, %145 : vector<1x16xf32>
    %cst_49 = arith.constant 9.99999974E-6 : f32
    %147 = vector.broadcast %cst_49 : f32 to vector<1x16xf32>
    %148 = arith.addf %146, %147 : vector<1x16xf32>
    %149 = math.rsqrt %148 : vector<1x16xf32>
    %150 = vector.broadcast %137 : vector<1x16xf32> to vector<128x16xf32>
    %151 = arith.subf %133, %150 : vector<128x16xf32>
    %152 = vector.broadcast %149 : vector<1x16xf32> to vector<128x16xf32>
    %153 = arith.mulf %151, %152 : vector<128x16xf32>
    %154 = arith.truncf %153 : vector<128x16xf32> to vector<128x16xbf16>
    %cst_50 = arith.constant 0.000000e+00 : bf16
    %155 = vector.broadcast %cst_50 : bf16 to vector<128x16xbf16>
    %156 = arith.maximumf %154, %155 : vector<128x16xbf16>
    %c0_51 = arith.constant 0 : index
    %c3 = arith.constant 3 : index
    %157 = vector.load %arg1[%c0_51, %c3] : memref<40x4xbf16, #tpu.memory_space<vmem>>, vector<40x1xbf16>
    %cst_52 = arith.constant dense<0.000000e+00> : vector<128x1xf32>
    %158 = tpu.matmul %106, %157, %cst_52 {dimension_numbers = #tpu.dot_dimension_numbers<[1], [0], [0], [1], [0, 0, 1, 1], [], []>} : vector<128x40xbf16>, vector<40x1xbf16>, vector<128x1xf32> -> vector<128x1xf32>
    %c0_53 = arith.constant 0 : index
    %c0_54 = arith.constant 0 : index
    %159 = vector.load %arg4[%c0_53, %c0_54] : memref<16x1xbf16, #tpu.memory_space<vmem>>, vector<16x1xbf16>
    %cst_55 = arith.constant dense<0.000000e+00> : vector<128x1xf32>
    %160 = tpu.matmul %156, %159, %cst_55 {dimension_numbers = #tpu.dot_dimension_numbers<[1], [0], [0], [1], [0, 0, 1, 1], [], []>} : vector<128x16xbf16>, vector<16x1xbf16>, vector<128x1xf32> -> vector<128x1xf32>
    %161 = arith.addf %158, %160 : vector<128x1xf32>
    %c0_56 = arith.constant 0 : index
    %162 = memref.load %arg5[%c0_56] : memref<1xf32, #tpu.memory_space<smem>>
    %163 = vector.broadcast %162 : f32 to vector<128x1xf32>
    %164 = arith.addf %161, %163 : vector<128x1xf32>
    %165 = arith.negf %164 : vector<128x1xf32>
    %166 = math.exp %165 : vector<128x1xf32>
    %cst_57 = arith.constant 1.000000e+00 : f32
    %167 = vector.broadcast %cst_57 : f32 to vector<128x1xf32>
    %168 = arith.addf %167, %166 : vector<128x1xf32>
    %169 = arith.divf %167, %168 : vector<128x1xf32>
    %c0_58 = arith.constant 0 : index
    %c0_59 = arith.constant 0 : index
    %170 = vector.load %arg6[%c0_58, %c0_59] : memref<128x1xf32, #tpu.memory_space<vmem>>, vector<128x1xf32>
    tpu.vector_store %arg6[%c0_58, %c0_59], %169 {strides = array<i32>} : memref<128x1xf32, #tpu.memory_space<vmem>>, vector<128x1xf32>,
    return
  }
}

</mosaic_0001>

<llo_original>
// kernel: tpu_custom_call.1
$region0: #{tpu_custom_call.1}
  #allocation0 [shape = 'u32[]', space=smem, size = 0x4, offset = 0x4, fixed_abs, tag = 'smem constant byte address 0x4 - core index']
  #allocation1 [shape = 'u32[144,128]{1,0:T(1,128)}', space=vmem, size = 0x12000, scoped, tag = 'internal scratch']
  #allocation2 [shape = 'f32[1]{0:T(128)S(6)}', space=smem, size = 0x200, scoped, tag = 'scoped memory for tpu_custom_call.1']
  %s0 = inlined_call_operand.vmem [shape: bf16[128,40], index: 0, kind: input, shape index: {}]
  %s1 = inlined_call_operand.vmem [shape: bf16[40,4], index: 1, kind: input, shape index: {}]
  %s2 = inlined_call_operand.vmem [shape: bf16[40,32], index: 2, kind: input, shape index: {}]
  %s3 = inlined_call_operand.vmem [shape: bf16[32,16], index: 3, kind: input, shape index: {}]
  %s4 = inlined_call_operand.vmem [shape: bf16[16,1], index: 4, kind: input, shape index: {}]
  %s5 = inlined_call_operand.<no memory space> [shape: f32[1], index: 5, kind: input, shape index: {}]
  %s6 = inlined_call_operand.vmem [shape: f32[128,1], index: 6, kind: output, shape index: {}]
  %s7 = sld [smem:[#allocation0]]
  $region34: #{tpu_custom_call.1} parent=0
    _
  %s9 = ssub.s32 1, %s7
  %s10 = scalar_select 0, %s9, %s7
  %11 = sst [smem:[#allocation2]] %s5
  // Predicated region
  $region2: #{tpu_custom_call.1} parent=0 // pred_check
    _
  $region3: #{tpu_custom_call.1} parent=0 // pred_check_branch
    %13 = sbr.rel (0) target = $region5
  $region4: #{tpu_custom_call.1} parent=0 // pred_region
    _
  $region5: #{tpu_custom_call.1} parent=0 // pred_fallthru
    _
  // Predicated region
  $region6: #{tpu_custom_call.1} parent=0 // pred_check
    _
  $region7: #{tpu_custom_call.1} parent=0 // pred_check_branch
    %15 = sbr.rel (0) target = $region9
  $region8: #{tpu_custom_call.1} parent=0 // pred_region
    _
  $region9: #{tpu_custom_call.1} parent=0 // pred_fallthru
    _
  // Predicated region
  $region10: #{tpu_custom_call.1} parent=0 // pred_check
    _
  $region11: #{tpu_custom_call.1} parent=0 // pred_check_branch
    %17 = sbr.rel (0) target = $region13
  $region12: #{tpu_custom_call.1} parent=0 // pred_region
    _
  $region13: #{tpu_custom_call.1} parent=0 // pred_fallthru
    _
  // Predicated region
  $region14: #{tpu_custom_call.1} parent=0 // pred_check
    _
  $region15: #{tpu_custom_call.1} parent=0 // pred_check_branch
    %19 = sbr.rel (0) target = $region17
  $region16: #{tpu_custom_call.1} parent=0 // pred_region
    _
  $region17: #{tpu_custom_call.1} parent=0 // pred_fallthru
    _
  // Predicated region
  $region18: #{tpu_custom_call.1} parent=0 // pred_check
    _
  $region19: #{tpu_custom_call.1} parent=0 // pred_check_branch
    %21 = sbr.rel (0) target = $region21
  $region20: #{tpu_custom_call.1} parent=0 // pred_region
    _
  $region21: #{tpu_custom_call.1} parent=0 // pred_fallthru
    _
  // Predicated region
  $region22: #{tpu_custom_call.1} parent=0 // pred_check
    _
  $region23: #{tpu_custom_call.1} parent=0 // pred_check_branch
    %23 = sbr.rel (0) target = $region25
  $region24: #{tpu_custom_call.1} parent=0 // pred_region
    _
  $region25: #{tpu_custom_call.1} parent=0 // pred_fallthru
    _
  %v25 = vld [vmem:[%s0] sm:$0xf]
  %v26 = vld [vmem:[%s0 + $0x4] sm:$0xf]
  %v27 = vld [vmem:[%s0 + $0x8] sm:$0xf]
  %v28 = vld [vmem:[%s0 + $0xc] sm:$0xf]
  %v29 = vld [vmem:[%s0 + $0x10] sm:$0xf]
  %v30 = vld [vmem:[%s0 + $0x14] sm:$0xf]
  %v31 = vld [vmem:[%s0 + $0x18] sm:$0xf]
  %v32 = vld [vmem:[%s0 + $0x1c] sm:$0xf]
  %v33 = vld [vmem:[%s0 + $0x20] sm:$0xf]
  %v34 = vld [vmem:[%s0 + $0x24] sm:$0xf]
  %v35 = vld [vmem:[%s0 + $0x28] sm:$0xf]
  %v36 = vld [vmem:[%s0 + $0x2c] sm:$0xf]
  %v37 = vld [vmem:[%s0 + $0x30] sm:$0xf]
  %v38 = vld [vmem:[%s0 + $0x34] sm:$0xf]
  %v39 = vld [vmem:[%s0 + $0x38] sm:$0xf]
  %v40 = vld [vmem:[%s0 + $0x3c] sm:$0xf]
  %v41 = vunpack.c.l.bf16 %v25
  %v42 = vunpack.c.l.bf16 %v26
  %v43 = vunpack.c.l.bf16 %v27
  %v44 = vunpack.c.l.bf16 %v28
  %v45 = vunpack.c.l.bf16 %v29
  %v46 = vunpack.c.l.bf16 %v30
  %v47 = vunpack.c.l.bf16 %v31
  %v48 = vunpack.c.l.bf16 %v32
  %v49 = vunpack.c.l.bf16 %v33
  %v50 = vunpack.c.l.bf16 %v34
  %v51 = vunpack.c.l.bf16 %v35
  %v52 = vunpack.c.l.bf16 %v36
  %v53 = vunpack.c.l.bf16 %v37
  %v54 = vunpack.c.l.bf16 %v38
  %v55 = vunpack.c.l.bf16 %v39
  %v56 = vunpack.c.l.bf16 %v40
  %vm57 = vcmask 326656
  %v58 = vsel %vm57, %v41, 0.0
  %v59 = vsel %vm57, %v42, 0.0
  %v60 = vadd.f32 %v58, %v59
  %v61 = vsel %vm57, %v43, 0.0
  %v62 = vadd.f32 %v60, %v61
  %v63 = vsel %vm57, %v44, 0.0
  %v64 = vadd.f32 %v62, %v63
  %v65 = vsel %vm57, %v45, 0.0
  %v66 = vadd.f32 %v64, %v65
  %v67 = vsel %vm57, %v46, 0.0
  %v68 = vadd.f32 %v66, %v67
  %v69 = vsel %vm57, %v47, 0.0
  %v70 = vadd.f32 %v68, %v69
  %v71 = vsel %vm57, %v48, 0.0
  %v72 = vadd.f32 %v70, %v71
  %v73 = vsel %vm57, %v49, 0.0
  %v74 = vadd.f32 %v72, %v73
  %v75 = vsel %vm57, %v50, 0.0
  %v76 = vadd.f32 %v74, %v75
  %v77 = vsel %vm57, %v51, 0.0
  %v78 = vadd.f32 %v76, %v77
  %v79 = vsel %vm57, %v52, 0.0
  %v80 = vadd.f32 %v78, %v79
  %v81 = vsel %vm57, %v53, 0.0
  %v82 = vadd.f32 %v80, %v81
  %v83 = vsel %vm57, %v54, 0.0
  %v84 = vadd.f32 %v82, %v83
  %v85 = vsel %vm57, %v55, 0.0
  %v86 = vadd.f32 %v84, %v85
  %v87 = vsel %vm57, %v56, 0.0
  %v88 = vadd.f32 %v86, %v87
  %v89 = vrot.slane %v88, 4
  %v90 = vadd.f32 %v88, %v89
  %v91 = vrot.slane %v90, 2
  %v92 = vadd.f32 %v90, %v91
  %v93 = vrot.slane %v92, 1
  %v94 = vadd.f32 %v92, %v93
  %v95 = vrcp.pop 128.0
  %v96 = vmul.f32 %v94, %v95
  %v97 = vmul.f32 %v41, %v41
  %v98 = vmul.f32 %v42, %v42
  %v99 = vmul.f32 %v43, %v43
  %v100 = vmul.f32 %v44, %v44
  %v101 = vmul.f32 %v45, %v45
  %v102 = vmul.f32 %v46, %v46
  %v103 = vmul.f32 %v47, %v47
  %v104 = vmul.f32 %v48, %v48
  %v105 = vmul.f32 %v49, %v49
  %v106 = vmul.f32 %v50, %v50
  %v107 = vmul.f32 %v51, %v51
  %v108 = vmul.f32 %v52, %v52
  %v109 = vmul.f32 %v53, %v53
  %v110 = vmul.f32 %v54, %v54
  %v111 = vmul.f32 %v55, %v55
  %v112 = vmul.f32 %v56, %v56
  %v113 = vsel %vm57, %v97, 0.0
  %v114 = vsel %vm57, %v98, 0.0
  %v115 = vadd.f32 %v113, %v114
  %v116 = vsel %vm57, %v99, 0.0
  %v117 = vadd.f32 %v115, %v116
  %v118 = vsel %vm57, %v100, 0.0
  %v119 = vadd.f32 %v117, %v118
  %v120 = vsel %vm57, %v101, 0.0
  %v121 = vadd.f32 %v119, %v120
  %v122 = vsel %vm57, %v102, 0.0
  %v123 = vadd.f32 %v121, %v122
  %v124 = vsel %vm57, %v103, 0.0
  %v125 = vadd.f32 %v123, %v124
  %v126 = vsel %vm57, %v104, 0.0
  %v127 = vadd.f32 %v125, %v126
  %v128 = vsel %vm57, %v105, 0.0
  %v129 = vadd.f32 %v127, %v128
  %v130 = vsel %vm57, %v106, 0.0
  %v131 = vadd.f32 %v129, %v130
  %v132 = vsel %vm57, %v107, 0.0
  %v133 = vadd.f32 %v131, %v132
  %v134 = vsel %vm57, %v108, 0.0
  %v135 = vadd.f32 %v133, %v134
  %v136 = vsel %vm57, %v109, 0.0
  %v137 = vadd.f32 %v135, %v136
  %v138 = vsel %vm57, %v110, 0.0
  %v139 = vadd.f32 %v137, %v138
  %v140 = vsel %vm57, %v111, 0.0
  %v141 = vadd.f32 %v139, %v140
  %v142 = vsel %vm57, %v112, 0.0
  %v143 = vadd.f32 %v141, %v142
  %v144 = vrot.slane %v143, 4
  %v145 = vadd.f32 %v143, %v144
  %v146 = vrot.slane %v145, 2
  %v147 = vadd.f32 %v145, %v146
  %v148 = vrot.slane %v147, 1
  %v149 = vadd.f32 %v147, %v148
  %v150 = vmul.f32 %v149, %v95
  %v151 = vmul.f32 %v96, %v96
  %v152 = vsub.f32 %v150, %v151
  %v153 = vmax.f32 %v152, 0.0
  %v154 = vadd.f32 %v153, 1e-05
  %v155 = vrsqrt.pop %v154
  %v156 = vsub.f32 %v41, %v96
  %v157 = vsub.f32 %v42, %v96
  %v158 = vsub.f32 %v43, %v96
  %v159 = vsub.f32 %v44, %v96
  %v160 = vsub.f32 %v45, %v96
  %v161 = vsub.f32 %v46, %v96
  %v162 = vsub.f32 %v47, %v96
  %v163 = vsub.f32 %v48, %v96
  %v164 = vsub.f32 %v49, %v96
  %v165 = vsub.f32 %v50, %v96
  %v166 = vsub.f32 %v51, %v96
  %v167 = vsub.f32 %v52, %v96
  %v168 = vsub.f32 %v53, %v96
  %v169 = vsub.f32 %v54, %v96
  %v170 = vsub.f32 %v55, %v96
  %v171 = vsub.f32 %v56, %v96
  %v172 = vmul.f32 %v156, %v155
  %v173 = vmul.f32 %v157, %v155
  %v174 = vmul.f32 %v158, %v155
  %v175 = vmul.f32 %v159, %v155
  %v176 = vmul.f32 %v160, %v155
  %v177 = vmul.f32 %v161, %v155
  %v178 = vmul.f32 %v162, %v155
  %v179 = vmul.f32 %v163, %v155
  %v180 = vmul.f32 %v164, %v155
  %v181 = vmul.f32 %v165, %v155
  %v182 = vmul.f32 %v166, %v155
  %v183 = vmul.f32 %v167, %v155
  %v184 = vmul.f32 %v168, %v155
  %v185 = vmul.f32 %v169, %v155
  %v186 = vmul.f32 %v170, %v155
  %v187 = vmul.f32 %v171, %v155
  %v188 = vpack.c.bf16 %v173, %v172
  %v189 = vpack.c.bf16 %v175, %v174
  %v190 = vpack.c.bf16 %v177, %v176
  %v191 = vpack.c.bf16 %v179, %v178
  %v192 = vpack.c.bf16 %v181, %v180
  %v193 = vpack.c.bf16 %v183, %v182
  %v194 = vpack.c.bf16 %v185, %v184
  %v195 = vpack.c.bf16 %v187, %v186
  %v196 = vld [vmem:[%s1] sm:$0xf]
  %v197 = vld [vmem:[%s1 + $0x4] sm:$0xf]
  %v198 = vld [vmem:[%s1 + $0x8] sm:$0xf]
  %v199 = vld [vmem:[%s1 + $0xc] sm:$0xf]
  %v200 = vld [vmem:[%s1 + $0x10] sm:$0xf]
  %v206 = vunpack.c.l.b16 %v196
  %v207 = vunpack.c.l.b16 %v197
  %v208 = vunpack.c.l.b16 %v198
  %v209 = vunpack.c.l.b16 %v199
  %v210 = vunpack.c.l.b16 %v200
  %v211 = vpack.c.b16 %v207, %v206
  %v212 = vpack.c.b16 %v209, %v208
  %v213 = vpack.c.b16 %v210, %v210
  %v217 = vsel %vm57, %v188, 0
  %v220 = vsel %vm57, %v189, 0
  %v223 = vsel %vm57, %v190, 0
  %v226 = vsel %vm57, %v191, 0
  %v229 = vsel %vm57, %v192, 0
  %v232 = vsel %vm57, %v193, 0
  %v235 = vsel %vm57, %v194, 0
  %v238 = vsel %vm57, %v195, 0
  %vm240 = vcmask 1043456
  %v242 = vsel %vm240, %v213, 0
  %244 = vmatprep.subr.bf16.mxu0 0
  %245 = vmatpush1.bf16.msra.mxu0 0
  %246 = vmatprep.subr.bf16.mxu0 0
  %247 = vmatpush1.bf16.msra.mxu0 0
  %248 = vmatprep.subr.bf16.mxu0 0
  %249 = vmatpush1.bf16.msra.mxu0 0
  %250 = vmatprep.subr.bf16.mxu0 0
  %251 = vmatpush1.bf16.msra.mxu0 0
  %252 = vmatprep.subr.bf16.mxu0 0
  %253 = vmatpush1.bf16.msra.mxu0 0
  %254 = vmatprep.subr.bf16.mxu0 0
  %255 = vmatpush1.bf16.msra.mxu0 %v242
  %256 = vmatprep.subr.bf16.mxu0 0
  %257 = vmatpush1.bf16.msra.mxu0 %v212
  %258 = vmatprep.subr.bf16.mxu0 0
  %259 = vmatpush1.bf16.msra.mxu0 %v211
  %260 = vmatprep.subr.bf16.mxu0 0
  %261 = vmatpush2.bf16.msra.mxu0 0
  %262 = vmatprep.subr.bf16.mxu0 0
  %263 = vmatpush2.bf16.msra.mxu0 0
  %264 = vmatprep.subr.bf16.mxu0 0
  %265 = vmatpush2.bf16.msra.mxu0 0
  %266 = vmatprep.subr.bf16.mxu0 0
  %267 = vmatpush2.bf16.msra.mxu0 0
  %268 = vmatprep.subr.bf16.mxu0 0
  %269 = vmatpush2.bf16.msra.mxu0 0
  %270 = vmatprep.subr.bf16.mxu0 0
  %271 = vmatpush2.bf16.msra.mxu0 0
  %272 = vmatprep.subr.bf16.mxu0 0
  %273 = vmatpush2.bf16.msra.mxu0 0
  %274 = vmatprep.subr.bf16.mxu0 0
  %275 = vmatpush2.bf16.msra.mxu0 0
  %276 = vmatprep.mubr.bf16.mxu0 0
  %277 = vmatmul.mubr.bf16.gmra.mxu0 %v217
  %v278 = vpop.f32.mrf.mxu0
  %v279 = vadd.f32 0.0, %v278
  %v280 = vpop.f32.mrf.mxu0
  %v281 = vpop.f32.mrf.mxu0
  %v282 = vadd.f32 0.0, %v281
  %v283 = vpop.f32.mrf.mxu0
  %284 = vmatprep.mubr.bf16.mxu0 0
  %285 = vmatmul.mubr.bf16.gmra.mxu0 %v220
  %v286 = vpop.f32.mrf.mxu0
  %v287 = vadd.f32 0.0, %v286
  %v288 = vpop.f32.mrf.mxu0
  %v289 = vpop.f32.mrf.mxu0
  %v290 = vadd.f32 0.0, %v289
  %v291 = vpop.f32.mrf.mxu0
  %292 = vmatprep.mubr.bf16.mxu0 0
  %293 = vmatmul.mubr.bf16.gmra.mxu0 %v223
  %v294 = vpop.f32.mrf.mxu0
  %v295 = vadd.f32 0.0, %v294
  %v296 = vpop.f32.mrf.mxu0
  %v297 = vpop.f32.mrf.mxu0
  %v298 = vadd.f32 0.0, %v297
  %v299 = vpop.f32.mrf.mxu0
  %300 = vmatprep.mubr.bf16.mxu0 0
  %301 = vmatmul.mubr.bf16.gmra.mxu0 %v226
  %v302 = vpop.f32.mrf.mxu0
  %v303 = vadd.f32 0.0, %v302
  %v304 = vpop.f32.mrf.mxu0
  %v305 = vpop.f32.mrf.mxu0
  %v306 = vadd.f32 0.0, %v305
  %v307 = vpop.f32.mrf.mxu0
  %308 = vmatprep.mubr.bf16.mxu0 0
  %309 = vmatmul.mubr.bf16.gmra.mxu0 %v229
  %v310 = vpop.f32.mrf.mxu0
  %v311 = vadd.f32 0.0, %v310
  %v312 = vpop.f32.mrf.mxu0
  %v313 = vpop.f32.mrf.mxu0
  %v314 = vadd.f32 0.0, %v313
  %v315 = vpop.f32.mrf.mxu0
  %316 = vmatprep.mubr.bf16.mxu0 0
  %317 = vmatmul.mubr.bf16.gmra.mxu0 %v232
  %v318 = vpop.f32.mrf.mxu0
  %v319 = vadd.f32 0.0, %v318
  %v320 = vpop.f32.mrf.mxu0
  %v321 = vpop.f32.mrf.mxu0
  %v322 = vadd.f32 0.0, %v321
  %v323 = vpop.f32.mrf.mxu0
  %324 = vmatprep.mubr.bf16.mxu0 0
  %325 = vmatmul.mubr.bf16.gmra.mxu0 %v235
  %v326 = vpop.f32.mrf.mxu0
  %v327 = vadd.f32 0.0, %v326
  %v328 = vpop.f32.mrf.mxu0
  %v329 = vpop.f32.mrf.mxu0
  %v330 = vadd.f32 0.0, %v329
  %v331 = vpop.f32.mrf.mxu0
  %332 = vmatprep.mubr.bf16.mxu0 0
  %333 = vmatmul.mubr.bf16.gmra.mxu0 %v238
  %v334 = vpop.f32.mrf.mxu0
  %v335 = vadd.f32 0.0, %v334
  %v336 = vpop.f32.mrf.mxu0
  %v337 = vpop.f32.mrf.mxu0
  %v338 = vadd.f32 0.0, %v337
  %v339 = vpop.f32.mrf.mxu0
  %340 = vdwg.mxu0
  %v341 = vunpack.c.l.bf16 %v188
  %v342 = vunpack.c.h.bf16 %v188
  %v343 = vunpack.c.l.bf16 %v189
  %v344 = vunpack.c.h.bf16 %v189
  %v345 = vunpack.c.l.bf16 %v190
  %v346 = vunpack.c.h.bf16 %v190
  %v347 = vunpack.c.l.bf16 %v191
  %v348 = vunpack.c.h.bf16 %v191
  %v349 = vunpack.c.l.bf16 %v192
  %v350 = vunpack.c.h.bf16 %v192
  %v351 = vunpack.c.l.bf16 %v193
  %v352 = vunpack.c.h.bf16 %v193
  %v353 = vunpack.c.l.bf16 %v194
  %v354 = vunpack.c.h.bf16 %v194
  %v355 = vunpack.c.l.bf16 %v195
  %v356 = vunpack.c.h.bf16 %v195
  %358 = vset.pattern.permute.xlu0 0
  %359 = vperm.xlu0 %358, %v279
  %v360 = vpop.permute.xlu0 %359
  %363 = vset.pattern.permute.xlu0 0
  %364 = vperm.xlu0 %363, %v282
  %v365 = vpop.permute.xlu0 %364
  %368 = vset.pattern.permute.xlu0 0
  %369 = vperm.xlu0 %368, %v287
  %v370 = vpop.permute.xlu0 %369
  %373 = vset.pattern.permute.xlu0 0
  %374 = vperm.xlu0 %373, %v290
  %v375 = vpop.permute.xlu0 %374
  %378 = vset.pattern.permute.xlu0 0
  %379 = vperm.xlu0 %378, %v295
  %v380 = vpop.permute.xlu0 %379
  %383 = vset.pattern.permute.xlu0 0
  %384 = vperm.xlu0 %383, %v298
  %v385 = vpop.permute.xlu0 %384
  %388 = vset.pattern.permute.xlu0 0
  %389 = vperm.xlu0 %388, %v303
  %v390 = vpop.permute.xlu0 %389
  %393 = vset.pattern.permute.xlu0 0
  %394 = vperm.xlu0 %393, %v306
  %v395 = vpop.permute.xlu0 %394
  %398 = vset.pattern.permute.xlu0 0
  %399 = vperm.xlu0 %398, %v311
  %v400 = vpop.permute.xlu0 %399
  %403 = vset.pattern.permute.xlu0 0
  %404 = vperm.xlu0 %403, %v314
  %v405 = vpop.permute.xlu0 %404
  %408 = vset.pattern.permute.xlu0 0
  %409 = vperm.xlu0 %408, %v319
  %v410 = vpop.permute.xlu0 %409
  %413 = vset.pattern.permute.xlu0 0
  %414 = vperm.xlu0 %413, %v322
  %v415 = vpop.permute.xlu0 %414
  %418 = vset.pattern.permute.xlu0 0
  %419 = vperm.xlu0 %418, %v327
  %v420 = vpop.permute.xlu0 %419
  %423 = vset.pattern.permute.xlu0 0
  %424 = vperm.xlu0 %423, %v330
  %v425 = vpop.permute.xlu0 %424
  %428 = vset.pattern.permute.xlu0 0
  %429 = vperm.xlu0 %428, %v335
  %v430 = vpop.permute.xlu0 %429
  %433 = vset.pattern.permute.xlu0 0
  %434 = vperm.xlu0 %433, %v338
  %v435 = vpop.permute.xlu0 %434
  %v437 = vmul.f32 %v341, %v360
  %v438 = vmul.f32 %v342, %v365
  %v439 = vmul.f32 %v343, %v370
  %v440 = vmul.f32 %v344, %v375
  %v441 = vmul.f32 %v345, %v380
  %v442 = vmul.f32 %v346, %v385
  %v443 = vmul.f32 %v347, %v390
  %v444 = vmul.f32 %v348, %v395
  %v445 = vmul.f32 %v349, %v400
  %v446 = vmul.f32 %v350, %v405
  %v447 = vmul.f32 %v351, %v410
  %v448 = vmul.f32 %v352, %v415
  %v449 = vmul.f32 %v353, %v420
  %v450 = vmul.f32 %v354, %v425
  %v451 = vmul.f32 %v355, %v430
  %v452 = vmul.f32 %v356, %v435
  %v453 = vadd.f32 %v437, %v341
  %v454 = vadd.f32 %v438, %v342
  %v455 = vadd.f32 %v439, %v343
  %v456 = vadd.f32 %v440, %v344
  %v457 = vadd.f32 %v441, %v345
  %v458 = vadd.f32 %v442, %v346
  %v459 = vadd.f32 %v443, %v347
  %v460 = vadd.f32 %v444, %v348
  %v461 = vadd.f32 %v445, %v349
  %v462 = vadd.f32 %v446, %v350
  %v463 = vadd.f32 %v447, %v351
  %v464 = vadd.f32 %v448, %v352
  %v465 = vadd.f32 %v449, %v353
  %v466 = vadd.f32 %v450, %v354
  %v467 = vadd.f32 %v451, %v355
  %v468 = vadd.f32 %v452, %v356
  %v469 = vsel %vm57, %v453, 0.0
  %v470 = vsel %vm57, %v454, 0.0
  %v471 = vadd.f32 %v469, %v470
  %v472 = vsel %vm57, %v455, 0.0
  %v473 = vadd.f32 %v471, %v472
  %v474 = vsel %vm57, %v456, 0.0
  %v475 = vadd.f32 %v473, %v474
  %v476 = vsel %vm57, %v457, 0.0
  %v477 = vadd.f32 %v475, %v476
  %v478 = vsel %vm57, %v458, 0.0
  %v479 = vadd.f32 %v477, %v478
  %v480 = vsel %vm57, %v459, 0.0
  %v481 = vadd.f32 %v479, %v480
  %v482 = vsel %vm57, %v460, 0.0
  %v483 = vadd.f32 %v481, %v482
  %v484 = vsel %vm57, %v461, 0.0
  %v485 = vadd.f32 %v483, %v484
  %v486 = vsel %vm57, %v462, 0.0
  %v487 = vadd.f32 %v485, %v486
  %v488 = vsel %vm57, %v463, 0.0
  %v489 = vadd.f32 %v487, %v488
  %v490 = vsel %vm57, %v464, 0.0
  %v491 = vadd.f32 %v489, %v490
  %v492 = vsel %vm57, %v465, 0.0
  %v493 = vadd.f32 %v491, %v492
  %v494 = vsel %vm57, %v466, 0.0
  %v495 = vadd.f32 %v493, %v494
  %v496 = vsel %vm57, %v467, 0.0
  %v497 = vadd.f32 %v495, %v496
  %v498 = vsel %vm57, %v468, 0.0
  %v499 = vadd.f32 %v497, %v498
  %v500 = vrot.slane %v499, 4
  %v501 = vadd.f32 %v499, %v500
  %v502 = vrot.slane %v501, 2
  %v503 = vadd.f32 %v501, %v502
  %v504 = vrot.slane %v503, 1
  %v505 = vadd.f32 %v503, %v504
  %v506 = vmul.f32 %v505, %v95
  %v507 = vmul.f32 %v453, %v453
  %v508 = vmul.f32 %v454, %v454
  %v509 = vmul.f32 %v455, %v455
  %v510 = vmul.f32 %v456, %v456
  %v511 = vmul.f32 %v457, %v457
  %v512 = vmul.f32 %v458, %v458
  %v513 = vmul.f32 %v459, %v459
  %v514 = vmul.f32 %v460, %v460
  %v515 = vmul.f32 %v461, %v461
  %v516 = vmul.f32 %v462, %v462
  %v517 = vmul.f32 %v463, %v463
  %v518 = vmul.f32 %v464, %v464
  %v519 = vmul.f32 %v465, %v465
  %v520 = vmul.f32 %v466, %v466
  %v521 = vmul.f32 %v467, %v467
  %v522 = vmul.f32 %v468, %v468
  %v523 = vsel %vm57, %v507, 0.0
  %v524 = vsel %vm57, %v508, 0.0
  %v525 = vadd.f32 %v523, %v524
  %v526 = vsel %vm57, %v509, 0.0
  %v527 = vadd.f32 %v525, %v526
  %v528 = vsel %vm57, %v510, 0.0
  %v529 = vadd.f32 %v527, %v528
  %v530 = vsel %vm57, %v511, 0.0
  %v531 = vadd.f32 %v529, %v530
  %v532 = vsel %vm57, %v512, 0.0
  %v533 = vadd.f32 %v531, %v532
  %v534 = vsel %vm57, %v513, 0.0
  %v535 = vadd.f32 %v533, %v534
  %v536 = vsel %vm57, %v514, 0.0
  %v537 = vadd.f32 %v535, %v536
  %v538 = vsel %vm57, %v515, 0.0
  %v539 = vadd.f32 %v537, %v538
  %v540 = vsel %vm57, %v516, 0.0
  %v541 = vadd.f32 %v539, %v540
  %v542 = vsel %vm57, %v517, 0.0
  %v543 = vadd.f32 %v541, %v542
  %v544 = vsel %vm57, %v518, 0.0
  %v545 = vadd.f32 %v543, %v544
  %v546 = vsel %vm57, %v519, 0.0
  %v547 = vadd.f32 %v545, %v546
  %v548 = vsel %vm57, %v520, 0.0
  %v549 = vadd.f32 %v547, %v548
  %v550 = vsel %vm57, %v521, 0.0
  %v551 = vadd.f32 %v549, %v550
  %v552 = vsel %vm57, %v522, 0.0
  %v553 = vadd.f32 %v551, %v552
  %v554 = vrot.slane %v553, 4
  %v555 = vadd.f32 %v553, %v554
  %v556 = vrot.slane %v555, 2
  %v557 = vadd.f32 %v555, %v556
  %v558 = vrot.slane %v557, 1
  %v559 = vadd.f32 %v557, %v558
  %v560 = vmul.f32 %v559, %v95
  %v561 = vmul.f32 %v506, %v506
  %v562 = vsub.f32 %v560, %v561
  %v563 = vmax.f32 %v562, 0.0
  %v564 = vadd.f32 %v563, 1e-05
  %v565 = vrsqrt.pop %v564
  %v566 = vsub.f32 %v453, %v506
  %v567 = vsub.f32 %v454, %v506
  %v568 = vsub.f32 %v455, %v506
  %v569 = vsub.f32 %v456, %v506
  %v570 = vsub.f32 %v457, %v506
  %v571 = vsub.f32 %v458, %v506
  %v572 = vsub.f32 %v459, %v506
  %v573 = vsub.f32 %v460, %v506
  %v574 = vsub.f32 %v461, %v506
  %v575 = vsub.f32 %v462, %v506
  %v576 = vsub.f32 %v463, %v506
  %v577 = vsub.f32 %v464, %v506
  %v578 = vsub.f32 %v465, %v506
  %v579 = vsub.f32 %v466, %v506
  %v580 = vsub.f32 %v467, %v506
  %v581 = vsub.f32 %v468, %v506
  %v582 = vmul.f32 %v566, %v565
  %v583 = vmul.f32 %v567, %v565
  %v584 = vmul.f32 %v568, %v565
  %v585 = vmul.f32 %v569, %v565
  %v586 = vmul.f32 %v570, %v565
  %v587 = vmul.f32 %v571, %v565
  %v588 = vmul.f32 %v572, %v565
  %v589 = vmul.f32 %v573, %v565
  %v590 = vmul.f32 %v574, %v565
  %v591 = vmul.f32 %v575, %v565
  %v592 = vmul.f32 %v576, %v565
  %v593 = vmul.f32 %v577, %v565
  %v594 = vmul.f32 %v578, %v565
  %v595 = vmul.f32 %v579, %v565
  %v596 = vmul.f32 %v580, %v565
  %v597 = vmul.f32 %v581, %v565
  %v598 = vpack.c.bf16 %v583, %v582
  %v599 = vpack.c.bf16 %v585, %v584
  %v600 = vpack.c.bf16 %v587, %v586
  %v601 = vpack.c.bf16 %v589, %v588
  %v602 = vpack.c.bf16 %v591, %v590
  %v603 = vpack.c.bf16 %v593, %v592
  %v604 = vpack.c.bf16 %v595, %v594
  %v605 = vpack.c.bf16 %v597, %v596
  %606 = vrot.lane.b32.xlu0 %v211, 127
  %v607 = vpop.permute.xlu0 %606
  %608 = vrot.lane.b32.xlu0 %v212, 127
  %v609 = vpop.permute.xlu0 %608
  %610 = vrot.lane.b32.xlu0 %v213, 127
  %v611 = vpop.permute.xlu0 %610
  %v615 = vsel %vm57, %v598, 0
  %v618 = vsel %vm57, %v599, 0
  %v621 = vsel %vm57, %v600, 0
  %v624 = vsel %vm57, %v601, 0
  %v627 = vsel %vm57, %v602, 0
  %v630 = vsel %vm57, %v603, 0
  %v633 = vsel %vm57, %v604, 0
  %v636 = vsel %vm57, %v605, 0
  %v639 = vsel %vm240, %v611, 0
  %641 = vmatprep.subr.bf16.mxu0 0
  %642 = vmatpush1.bf16.msra.mxu0 0
  %643 = vmatprep.subr.bf16.mxu0 0
  %644 = vmatpush1.bf16.msra.mxu0 0
  %645 = vmatprep.subr.bf16.mxu0 0
  %646 = vmatpush1.bf16.msra.mxu0 0
  %647 = vmatprep.subr.bf16.mxu0 0
  %648 = vmatpush1.bf16.msra.mxu0 0
  %649 = vmatprep.subr.bf16.mxu0 0
  %650 = vmatpush1.bf16.msra.mxu0 0
  %651 = vmatprep.subr.bf16.mxu0 0
  %652 = vmatpush1.bf16.msra.mxu0 %v639
  %653 = vmatprep.subr.bf16.mxu0 0
  %654 = vmatpush1.bf16.msra.mxu0 %v609
  %655 = vmatprep.subr.bf16.mxu0 0
  %656 = vmatpush1.bf16.msra.mxu0 %v607
  %657 = vmatprep.subr.bf16.mxu0 0
  %658 = vmatpush2.bf16.msra.mxu0 0
  %659 = vmatprep.subr.bf16.mxu0 0
  %660 = vmatpush2.bf16.msra.mxu0 0
  %661 = vmatprep.subr.bf16.mxu0 0
  %662 = vmatpush2.bf16.msra.mxu0 0
  %663 = vmatprep.subr.bf16.mxu0 0
  %664 = vmatpush2.bf16.msra.mxu0 0
  %665 = vmatprep.subr.bf16.mxu0 0
  %666 = vmatpush2.bf16.msra.mxu0 0
  %667 = vmatprep.subr.bf16.mxu0 0
  %668 = vmatpush2.bf16.msra.mxu0 0
  %669 = vmatprep.subr.bf16.mxu0 0
  %670 = vmatpush2.bf16.msra.mxu0 0
  %671 = vmatprep.subr.bf16.mxu0 0
  %672 = vmatpush2.bf16.msra.mxu0 0
  %673 = vmatprep.mubr.bf16.mxu0 0
  %674 = vmatmul.mubr.bf16.gmra.mxu0 %v615
  %v675 = vpop.f32.mrf.mxu0
  %v676 = vadd.f32 0.0, %v675
  %v677 = vpop.f32.mrf.mxu0
  %v678 = vpop.f32.mrf.mxu0
  %v679 = vadd.f32 0.0, %v678
  %v680 = vpop.f32.mrf.mxu0
  %681 = vmatprep.mubr.bf16.mxu0 0
  %682 = vmatmul.mubr.bf16.gmra.mxu0 %v618
  %v683 = vpop.f32.mrf.mxu0
  %v684 = vadd.f32 0.0, %v683
  %v685 = vpop.f32.mrf.mxu0
  %v686 = vpop.f32.mrf.mxu0
  %v687 = vadd.f32 0.0, %v686
  %v688 = vpop.f32.mrf.mxu0
  %689 = vmatprep.mubr.bf16.mxu0 0
  %690 = vmatmul.mubr.bf16.gmra.mxu0 %v621
  %v691 = vpop.f32.mrf.mxu0
  %v692 = vadd.f32 0.0, %v691
  %v693 = vpop.f32.mrf.mxu0
  %v694 = vpop.f32.mrf.mxu0
  %v695 = vadd.f32 0.0, %v694
  %v696 = vpop.f32.mrf.mxu0
  %697 = vmatprep.mubr.bf16.mxu0 0
  %698 = vmatmul.mubr.bf16.gmra.mxu0 %v624
  %v699 = vpop.f32.mrf.mxu0
  %v700 = vadd.f32 0.0, %v699
  %v701 = vpop.f32.mrf.mxu0
  %v702 = vpop.f32.mrf.mxu0
  %v703 = vadd.f32 0.0, %v702
  %v704 = vpop.f32.mrf.mxu0
  %705 = vmatprep.mubr.bf16.mxu0 0
  %706 = vmatmul.mubr.bf16.gmra.mxu0 %v627
  %v707 = vpop.f32.mrf.mxu0
  %v708 = vadd.f32 0.0, %v707
  %v709 = vpop.f32.mrf.mxu0
  %v710 = vpop.f32.mrf.mxu0
  %v711 = vadd.f32 0.0, %v710
  %v712 = vpop.f32.mrf.mxu0
  %713 = vmatprep.mubr.bf16.mxu0 0
  %714 = vmatmul.mubr.bf16.gmra.mxu0 %v630
  %v715 = vpop.f32.mrf.mxu0
  %v716 = vadd.f32 0.0, %v715
  %v717 = vpop.f32.mrf.mxu0
  %v718 = vpop.f32.mrf.mxu0
  %v719 = vadd.f32 0.0, %v718
  %v720 = vpop.f32.mrf.mxu0
  %721 = vmatprep.mubr.bf16.mxu0 0
  %722 = vmatmul.mubr.bf16.gmra.mxu0 %v633
  %v723 = vpop.f32.mrf.mxu0
  %v724 = vadd.f32 0.0, %v723
  %v725 = vpop.f32.mrf.mxu0
  %v726 = vpop.f32.mrf.mxu0
  %v727 = vadd.f32 0.0, %v726
  %v728 = vpop.f32.mrf.mxu0
  %729 = vmatprep.mubr.bf16.mxu0 0
  %730 = vmatmul.mubr.bf16.gmra.mxu0 %v636
  %v731 = vpop.f32.mrf.mxu0
  %v732 = vadd.f32 0.0, %v731
  %v733 = vpop.f32.mrf.mxu0
  %v734 = vpop.f32.mrf.mxu0
  %v735 = vadd.f32 0.0, %v734
  %v736 = vpop.f32.mrf.mxu0
  %737 = vdwg.mxu0
  %739 = vset.pattern.permute.xlu0 0
  %740 = vperm.xlu0 %739, %v676
  %v741 = vpop.permute.xlu0 %740
  %744 = vset.pattern.permute.xlu0 0
  %745 = vperm.xlu0 %744, %v679
  %v746 = vpop.permute.xlu0 %745
  %749 = vset.pattern.permute.xlu0 0
  %750 = vperm.xlu0 %749, %v684
  %v751 = vpop.permute.xlu0 %750
  %754 = vset.pattern.permute.xlu0 0
  %755 = vperm.xlu0 %754, %v687
  %v756 = vpop.permute.xlu0 %755
  %759 = vset.pattern.permute.xlu0 0
  %760 = vperm.xlu0 %759, %v692
  %v761 = vpop.permute.xlu0 %760
  %764 = vset.pattern.permute.xlu0 0
  %765 = vperm.xlu0 %764, %v695
  %v766 = vpop.permute.xlu0 %765
  %769 = vset.pattern.permute.xlu0 0
  %770 = vperm.xlu0 %769, %v700
  %v771 = vpop.permute.xlu0 %770
  %774 = vset.pattern.permute.xlu0 0
  %775 = vperm.xlu0 %774, %v703
  %v776 = vpop.permute.xlu0 %775
  %779 = vset.pattern.permute.xlu0 0
  %780 = vperm.xlu0 %779, %v708
  %v781 = vpop.permute.xlu0 %780
  %784 = vset.pattern.permute.xlu0 0
  %785 = vperm.xlu0 %784, %v711
  %v786 = vpop.permute.xlu0 %785
  %789 = vset.pattern.permute.xlu0 0
  %790 = vperm.xlu0 %789, %v716
  %v791 = vpop.permute.xlu0 %790
  %794 = vset.pattern.permute.xlu0 0
  %795 = vperm.xlu0 %794, %v719
  %v796 = vpop.permute.xlu0 %795
  %799 = vset.pattern.permute.xlu0 0
  %800 = vperm.xlu0 %799, %v724
  %v801 = vpop.permute.xlu0 %800
  %804 = vset.pattern.permute.xlu0 0
  %805 = vperm.xlu0 %804, %v727
  %v806 = vpop.permute.xlu0 %805
  %809 = vset.pattern.permute.xlu0 0
  %810 = vperm.xlu0 %809, %v732
  %v811 = vpop.permute.xlu0 %810
  %814 = vset.pattern.permute.xlu0 0
  %815 = vperm.xlu0 %814, %v735
  %v816 = vpop.permute.xlu0 %815
  %v818 = vmul.f32 %v341, %v741
  %v819 = vmul.f32 %v342, %v746
  %v820 = vmul.f32 %v343, %v751
  %v821 = vmul.f32 %v344, %v756
  %v822 = vmul.f32 %v345, %v761
  %v823 = vmul.f32 %v346, %v766
  %v824 = vmul.f32 %v347, %v771
  %v825 = vmul.f32 %v348, %v776
  %v826 = vmul.f32 %v349, %v781
  %v827 = vmul.f32 %v350, %v786
  %v828 = vmul.f32 %v351, %v791
  %v829 = vmul.f32 %v352, %v796
  %v830 = vmul.f32 %v353, %v801
  %v831 = vmul.f32 %v354, %v806
  %v832 = vmul.f32 %v355, %v811
  %v833 = vmul.f32 %v356, %v816
  %v834 = vunpack.c.l.bf16 %v598
  %v835 = vunpack.c.h.bf16 %v598
  %v836 = vunpack.c.l.bf16 %v599
  %v837 = vunpack.c.h.bf16 %v599
  %v838 = vunpack.c.l.bf16 %v600
  %v839 = vunpack.c.h.bf16 %v600
  %v840 = vunpack.c.l.bf16 %v601
  %v841 = vunpack.c.h.bf16 %v601
  %v842 = vunpack.c.l.bf16 %v602
  %v843 = vunpack.c.h.bf16 %v602
  %v844 = vunpack.c.l.bf16 %v603
  %v845 = vunpack.c.h.bf16 %v603
  %v846 = vunpack.c.l.bf16 %v604
  %v847 = vunpack.c.h.bf16 %v604
  %v848 = vunpack.c.l.bf16 %v605
  %v849 = vunpack.c.h.bf16 %v605
  %v850 = vadd.f32 %v818, %v834
  %v851 = vadd.f32 %v819, %v835
  %v852 = vadd.f32 %v820, %v836
  %v853 = vadd.f32 %v821, %v837
  %v854 = vadd.f32 %v822, %v838
  %v855 = vadd.f32 %v823, %v839
  %v856 = vadd.f32 %v824, %v840
  %v857 = vadd.f32 %v825, %v841
  %v858 = vadd.f32 %v826, %v842
  %v859 = vadd.f32 %v827, %v843
  %v860 = vadd.f32 %v828, %v844
  %v861 = vadd.f32 %v829, %v845
  %v862 = vadd.f32 %v830, %v846
  %v863 = vadd.f32 %v831, %v847
  %v864 = vadd.f32 %v832, %v848
  %v865 = vadd.f32 %v833, %v849
  %v866 = vsel %vm57, %v850, 0.0
  %v867 = vsel %vm57, %v851, 0.0
  %v868 = vadd.f32 %v866, %v867
  %v869 = vsel %vm57, %v852, 0.0
  %v870 = vadd.f32 %v868, %v869
  %v871 = vsel %vm57, %v853, 0.0
  %v872 = vadd.f32 %v870, %v871
  %v873 = vsel %vm57, %v854, 0.0
  %v874 = vadd.f32 %v872, %v873
  %v875 = vsel %vm57, %v855, 0.0
  %v876 = vadd.f32 %v874, %v875
  %v877 = vsel %vm57, %v856, 0.0
  %v878 = vadd.f32 %v876, %v877
  %v879 = vsel %vm57, %v857, 0.0
  %v880 = vadd.f32 %v878, %v879
  %v881 = vsel %vm57, %v858, 0.0
  %v882 = vadd.f32 %v880, %v881
  %v883 = vsel %vm57, %v859, 0.0
  %v884 = vadd.f32 %v882, %v883
  %v885 = vsel %vm57, %v860, 0.0
  %v886 = vadd.f32 %v884, %v885
  %v887 = vsel %vm57, %v861, 0.0
  %v888 = vadd.f32 %v886, %v887
  %v889 = vsel %vm57, %v862, 0.0
  %v890 = vadd.f32 %v888, %v889
  %v891 = vsel %vm57, %v863, 0.0
  %v892 = vadd.f32 %v890, %v891
  %v893 = vsel %vm57, %v864, 0.0
  %v894 = vadd.f32 %v892, %v893
  %v895 = vsel %vm57, %v865, 0.0
  %v896 = vadd.f32 %v894, %v895
  %v897 = vrot.slane %v896, 4
  %v898 = vadd.f32 %v896, %v897
  %v899 = vrot.slane %v898, 2
  %v900 = vadd.f32 %v898, %v899
  %v901 = vrot.slane %v900, 1
  %v902 = vadd.f32 %v900, %v901
  %v903 = vmul.f32 %v902, %v95
  %v904 = vmul.f32 %v850, %v850
  %v905 = vmul.f32 %v851, %v851
  %v906 = vmul.f32 %v852, %v852
  %v907 = vmul.f32 %v853, %v853
  %v908 = vmul.f32 %v854, %v854
  %v909 = vmul.f32 %v855, %v855
  %v910 = vmul.f32 %v856, %v856
  %v911 = vmul.f32 %v857, %v857
  %v912 = vmul.f32 %v858, %v858
  %v913 = vmul.f32 %v859, %v859
  %v914 = vmul.f32 %v860, %v860
  %v915 = vmul.f32 %v861, %v861
  %v916 = vmul.f32 %v862, %v862
  %v917 = vmul.f32 %v863, %v863
  %v918 = vmul.f32 %v864, %v864
  %v919 = vmul.f32 %v865, %v865
  %v920 = vsel %vm57, %v904, 0.0
  %v921 = vsel %vm57, %v905, 0.0
  %v922 = vadd.f32 %v920, %v921
  %v923 = vsel %vm57, %v906, 0.0
  %v924 = vadd.f32 %v922, %v923
  %v925 = vsel %vm57, %v907, 0.0
  %v926 = vadd.f32 %v924, %v925
  %v927 = vsel %vm57, %v908, 0.0
  %v928 = vadd.f32 %v926, %v927
  %v929 = vsel %vm57, %v909, 0.0
  %v930 = vadd.f32 %v928, %v929
  %v931 = vsel %vm57, %v910, 0.0
  %v932 = vadd.f32 %v930, %v931
  %v933 = vsel %vm57, %v911, 0.0
  %v934 = vadd.f32 %v932, %v933
  %v935 = vsel %vm57, %v912, 0.0
  %v936 = vadd.f32 %v934, %v935
  %v937 = vsel %vm57, %v913, 0.0
  %v938 = vadd.f32 %v936, %v937
  %v939 = vsel %vm57, %v914, 0.0
  %v940 = vadd.f32 %v938, %v939
  %v941 = vsel %vm57, %v915, 0.0
  %v942 = vadd.f32 %v940, %v941
  %v943 = vsel %vm57, %v916, 0.0
  %v944 = vadd.f32 %v942, %v943
  %v945 = vsel %vm57, %v917, 0.0
  %v946 = vadd.f32 %v944, %v945
  %v947 = vsel %vm57, %v918, 0.0
  %v948 = vadd.f32 %v946, %v947
  %v949 = vsel %vm57, %v919, 0.0
  %v950 = vadd.f32 %v948, %v949
  %v951 = vrot.slane %v950, 4
  %v952 = vadd.f32 %v950, %v951
  %v953 = vrot.slane %v952, 2
  %v954 = vadd.f32 %v952, %v953
  %v955 = vrot.slane %v954, 1
  %v956 = vadd.f32 %v954, %v955
  %v957 = vmul.f32 %v956, %v95
  %v958 = vmul.f32 %v903, %v903
  %v959 = vsub.f32 %v957, %v958
  %v960 = vmax.f32 %v959, 0.0
  %v961 = vadd.f32 %v960, 1e-05
  %v962 = vrsqrt.pop %v961
  %v963 = vsub.f32 %v850, %v903
  %v964 = vsub.f32 %v851, %v903
  %v965 = vsub.f32 %v852, %v903
  %v966 = vsub.f32 %v853, %v903
  %v967 = vsub.f32 %v854, %v903
  %v968 = vsub.f32 %v855, %v903
  %v969 = vsub.f32 %v856, %v903
  %v970 = vsub.f32 %v857, %v903
  %v971 = vsub.f32 %v858, %v903
  %v972 = vsub.f32 %v859, %v903
  %v973 = vsub.f32 %v860, %v903
  %v974 = vsub.f32 %v861, %v903
  %v975 = vsub.f32 %v862, %v903
  %v976 = vsub.f32 %v863, %v903
  %v977 = vsub.f32 %v864, %v903
  %v978 = vsub.f32 %v865, %v903
  %v979 = vmul.f32 %v963, %v962
  %v980 = vmul.f32 %v964, %v962
  %v981 = vmul.f32 %v965, %v962
  %v982 = vmul.f32 %v966, %v962
  %v983 = vmul.f32 %v967, %v962
  %v984 = vmul.f32 %v968, %v962
  %v985 = vmul.f32 %v969, %v962
  %v986 = vmul.f32 %v970, %v962
  %v987 = vmul.f32 %v971, %v962
  %v988 = vmul.f32 %v972, %v962
  %v989 = vmul.f32 %v973, %v962
  %v990 = vmul.f32 %v974, %v962
  %v991 = vmul.f32 %v975, %v962
  %v992 = vmul.f32 %v976, %v962
  %v993 = vmul.f32 %v977, %v962
  %v994 = vmul.f32 %v978, %v962
  %v995 = vpack.c.bf16 %v980, %v979
  %v996 = vpack.c.bf16 %v982, %v981
  %v997 = vpack.c.bf16 %v984, %v983
  %v998 = vpack.c.bf16 %v986, %v985
  %v999 = vpack.c.bf16 %v988, %v987
  %v1000 = vpack.c.bf16 %v990, %v989
  %v1001 = vpack.c.bf16 %v992, %v991
  %v1002 = vpack.c.bf16 %v994, %v993
  %1003 = vrot.lane.b32.xlu0 %v211, 126
  %v1004 = vpop.permute.xlu0 %1003
  %1005 = vrot.lane.b32.xlu0 %v212, 126
  %v1006 = vpop.permute.xlu0 %1005
  %1007 = vrot.lane.b32.xlu0 %v213, 126
  %v1008 = vpop.permute.xlu0 %1007
  %v1012 = vsel %vm57, %v995, 0
  %v1015 = vsel %vm57, %v996, 0
  %v1018 = vsel %vm57, %v997, 0
  %v1021 = vsel %vm57, %v998, 0
  %v1024 = vsel %vm57, %v999, 0
  %v1027 = vsel %vm57, %v1000, 0
  %v1030 = vsel %vm57, %v1001, 0
  %v1033 = vsel %vm57, %v1002, 0
  %v1036 = vsel %vm240, %v1008, 0
  %1038 = vmatprep.subr.bf16.mxu0 0
  %1039 = vmatpush1.bf16.msra.mxu0 0
  %1040 = vmatprep.subr.bf16.mxu0 0
  %1041 = vmatpush1.bf16.msra.mxu0 0
  %1042 = vmatprep.subr.bf16.mxu0 0
  %1043 = vmatpush1.bf16.msra.mxu0 0
  %1044 = vmatprep.subr.bf16.mxu0 0
  %1045 = vmatpush1.bf16.msra.mxu0 0
  %1046 = vmatprep.subr.bf16.mxu0 0
  %1047 = vmatpush1.bf16.msra.mxu0 0
  %1048 = vmatprep.subr.bf16.mxu0 0
  %1049 = vmatpush1.bf16.msra.mxu0 %v1036
  %1050 = vmatprep.subr.bf16.mxu0 0
  %1051 = vmatpush1.bf16.msra.mxu0 %v1006
  %1052 = vmatprep.subr.bf16.mxu0 0
  %1053 = vmatpush1.bf16.msra.mxu0 %v1004
  %1054 = vmatprep.subr.bf16.mxu0 0
  %1055 = vmatpush2.bf16.msra.mxu0 0
  %1056 = vmatprep.subr.bf16.mxu0 0
  %1057 = vmatpush2.bf16.msra.mxu0 0
  %1058 = vmatprep.subr.bf16.mxu0 0
  %1059 = vmatpush2.bf16.msra.mxu0 0
  %1060 = vmatprep.subr.bf16.mxu0 0
  %1061 = vmatpush2.bf16.msra.mxu0 0
  %1062 = vmatprep.subr.bf16.mxu0 0
  %1063 = vmatpush2.bf16.msra.mxu0 0
  %1064 = vmatprep.subr.bf16.mxu0 0
  %1065 = vmatpush2.bf16.msra.mxu0 0
  %1066 = vmatprep.subr.bf16.mxu0 0
  %1067 = vmatpush2.bf16.msra.mxu0 0
  %1068 = vmatprep.subr.bf16.mxu0 0
  %1069 = vmatpush2.bf16.msra.mxu0 0
  %1070 = vmatprep.mubr.bf16.mxu0 0
  %1071 = vmatmul.mubr.bf16.gmra.mxu0 %v1012
  %v1072 = vpop.f32.mrf.mxu0
  %v1073 = vadd.f32 0.0, %v1072
  %v1074 = vpop.f32.mrf.mxu0
  %v1075 = vpop.f32.mrf.mxu0
  %v1076 = vadd.f32 0.0, %v1075
  %v1077 = vpop.f32.mrf.mxu0
  %1078 = vmatprep.mubr.bf16.mxu0 0
  %1079 = vmatmul.mubr.bf16.gmra.mxu0 %v1015
  %v1080 = vpop.f32.mrf.mxu0
  %v1081 = vadd.f32 0.0, %v1080
  %v1082 = vpop.f32.mrf.mxu0
  %v1083 = vpop.f32.mrf.mxu0
  %v1084 = vadd.f32 0.0, %v1083
  %v1085 = vpop.f32.mrf.mxu0
  %1086 = vmatprep.mubr.bf16.mxu0 0
  %1087 = vmatmul.mubr.bf16.gmra.mxu0 %v1018
  %v1088 = vpop.f32.mrf.mxu0
  %v1089 = vadd.f32 0.0, %v1088
  %v1090 = vpop.f32.mrf.mxu0
  %v1091 = vpop.f32.mrf.mxu0
  %v1092 = vadd.f32 0.0, %v1091
  %v1093 = vpop.f32.mrf.mxu0
  %1094 = vmatprep.mubr.bf16.mxu0 0
  %1095 = vmatmul.mubr.bf16.gmra.mxu0 %v1021
  %v1096 = vpop.f32.mrf.mxu0
  %v1097 = vadd.f32 0.0, %v1096
  %v1098 = vpop.f32.mrf.mxu0
  %v1099 = vpop.f32.mrf.mxu0
  %v1100 = vadd.f32 0.0, %v1099
  %v1101 = vpop.f32.mrf.mxu0
  %1102 = vmatprep.mubr.bf16.mxu0 0
  %1103 = vmatmul.mubr.bf16.gmra.mxu0 %v1024
  %v1104 = vpop.f32.mrf.mxu0
  %v1105 = vadd.f32 0.0, %v1104
  %v1106 = vpop.f32.mrf.mxu0
  %v1107 = vpop.f32.mrf.mxu0
  %v1108 = vadd.f32 0.0, %v1107
  %v1109 = vpop.f32.mrf.mxu0
  %1110 = vmatprep.mubr.bf16.mxu0 0
  %1111 = vmatmul.mubr.bf16.gmra.mxu0 %v1027
  %v1112 = vpop.f32.mrf.mxu0
  %v1113 = vadd.f32 0.0, %v1112
  %v1114 = vpop.f32.mrf.mxu0
  %v1115 = vpop.f32.mrf.mxu0
  %v1116 = vadd.f32 0.0, %v1115
  %v1117 = vpop.f32.mrf.mxu0
  %1118 = vmatprep.mubr.bf16.mxu0 0
  %1119 = vmatmul.mubr.bf16.gmra.mxu0 %v1030
  %v1120 = vpop.f32.mrf.mxu0
  %v1121 = vadd.f32 0.0, %v1120
  %v1122 = vpop.f32.mrf.mxu0
  %v1123 = vpop.f32.mrf.mxu0
  %v1124 = vadd.f32 0.0, %v1123
  %v1125 = vpop.f32.mrf.mxu0
  %1126 = vmatprep.mubr.bf16.mxu0 0
  %1127 = vmatmul.mubr.bf16.gmra.mxu0 %v1033
  %v1128 = vpop.f32.mrf.mxu0
  %v1129 = vadd.f32 0.0, %v1128
  %v1130 = vpop.f32.mrf.mxu0
  %v1131 = vpop.f32.mrf.mxu0
  %v1132 = vadd.f32 0.0, %v1131
  %v1133 = vpop.f32.mrf.mxu0
  %1134 = vdwg.mxu0
  %1136 = vset.pattern.permute.xlu0 0
  %1137 = vperm.xlu0 %1136, %v1073
  %v1138 = vpop.permute.xlu0 %1137
  %1141 = vset.pattern.permute.xlu0 0
  %1142 = vperm.xlu0 %1141, %v1076
  %v1143 = vpop.permute.xlu0 %1142
  %1146 = vset.pattern.permute.xlu0 0
  %1147 = vperm.xlu0 %1146, %v1081
  %v1148 = vpop.permute.xlu0 %1147
  %1151 = vset.pattern.permute.xlu0 0
  %1152 = vperm.xlu0 %1151, %v1084
  %v1153 = vpop.permute.xlu0 %1152
  %1156 = vset.pattern.permute.xlu0 0
  %1157 = vperm.xlu0 %1156, %v1089
  %v1158 = vpop.permute.xlu0 %1157
  %1161 = vset.pattern.permute.xlu0 0
  %1162 = vperm.xlu0 %1161, %v1092
  %v1163 = vpop.permute.xlu0 %1162
  %1166 = vset.pattern.permute.xlu0 0
  %1167 = vperm.xlu0 %1166, %v1097
  %v1168 = vpop.permute.xlu0 %1167
  %1171 = vset.pattern.permute.xlu0 0
  %1172 = vperm.xlu0 %1171, %v1100
  %v1173 = vpop.permute.xlu0 %1172
  %1176 = vset.pattern.permute.xlu0 0
  %1177 = vperm.xlu0 %1176, %v1105
  %v1178 = vpop.permute.xlu0 %1177
  %1181 = vset.pattern.permute.xlu0 0
  %1182 = vperm.xlu0 %1181, %v1108
  %v1183 = vpop.permute.xlu0 %1182
  %1186 = vset.pattern.permute.xlu0 0
  %1187 = vperm.xlu0 %1186, %v1113
  %v1188 = vpop.permute.xlu0 %1187
  %1191 = vset.pattern.permute.xlu0 0
  %1192 = vperm.xlu0 %1191, %v1116
  %v1193 = vpop.permute.xlu0 %1192
  %1196 = vset.pattern.permute.xlu0 0
  %1197 = vperm.xlu0 %1196, %v1121
  %v1198 = vpop.permute.xlu0 %1197
  %1201 = vset.pattern.permute.xlu0 0
  %1202 = vperm.xlu0 %1201, %v1124
  %v1203 = vpop.permute.xlu0 %1202
  %1206 = vset.pattern.permute.xlu0 0
  %1207 = vperm.xlu0 %1206, %v1129
  %v1208 = vpop.permute.xlu0 %1207
  %1211 = vset.pattern.permute.xlu0 0
  %1212 = vperm.xlu0 %1211, %v1132
  %v1213 = vpop.permute.xlu0 %1212
  %v1215 = vmul.f32 %v341, %v1138
  %v1216 = vmul.f32 %v342, %v1143
  %v1217 = vmul.f32 %v343, %v1148
  %v1218 = vmul.f32 %v344, %v1153
  %v1219 = vmul.f32 %v345, %v1158
  %v1220 = vmul.f32 %v346, %v1163
  %v1221 = vmul.f32 %v347, %v1168
  %v1222 = vmul.f32 %v348, %v1173
  %v1223 = vmul.f32 %v349, %v1178
  %v1224 = vmul.f32 %v350, %v1183
  %v1225 = vmul.f32 %v351, %v1188
  %v1226 = vmul.f32 %v352, %v1193
  %v1227 = vmul.f32 %v353, %v1198
  %v1228 = vmul.f32 %v354, %v1203
  %v1229 = vmul.f32 %v355, %v1208
  %v1230 = vmul.f32 %v356, %v1213
  %v1231 = vunpack.c.l.bf16 %v995
  %v1232 = vunpack.c.h.bf16 %v995
  %v1233 = vunpack.c.l.bf16 %v996
  %v1234 = vunpack.c.h.bf16 %v996
  %v1235 = vunpack.c.l.bf16 %v997
  %v1236 = vunpack.c.h.bf16 %v997
  %v1237 = vunpack.c.l.bf16 %v998
  %v1238 = vunpack.c.h.bf16 %v998
  %v1239 = vunpack.c.l.bf16 %v999
  %v1240 = vunpack.c.h.bf16 %v999
  %v1241 = vunpack.c.l.bf16 %v1000
  %v1242 = vunpack.c.h.bf16 %v1000
  %v1243 = vunpack.c.l.bf16 %v1001
  %v1244 = vunpack.c.h.bf16 %v1001
  %v1245 = vunpack.c.l.bf16 %v1002
  %v1246 = vunpack.c.h.bf16 %v1002
  %v1247 = vadd.f32 %v1215, %v1231
  %v1248 = vadd.f32 %v1216, %v1232
  %v1249 = vadd.f32 %v1217, %v1233
  %v1250 = vadd.f32 %v1218, %v1234
  %v1251 = vadd.f32 %v1219, %v1235
  %v1252 = vadd.f32 %v1220, %v1236
  %v1253 = vadd.f32 %v1221, %v1237
  %v1254 = vadd.f32 %v1222, %v1238
  %v1255 = vadd.f32 %v1223, %v1239
  %v1256 = vadd.f32 %v1224, %v1240
  %v1257 = vadd.f32 %v1225, %v1241
  %v1258 = vadd.f32 %v1226, %v1242
  %v1259 = vadd.f32 %v1227, %v1243
  %v1260 = vadd.f32 %v1228, %v1244
  %v1261 = vadd.f32 %v1229, %v1245
  %v1262 = vadd.f32 %v1230, %v1246
  %v1263 = vsel %vm57, %v1247, 0.0
  %v1264 = vsel %vm57, %v1248, 0.0
  %v1265 = vadd.f32 %v1263, %v1264
  %v1266 = vsel %vm57, %v1249, 0.0
  %v1267 = vadd.f32 %v1265, %v1266
  %v1268 = vsel %vm57, %v1250, 0.0
  %v1269 = vadd.f32 %v1267, %v1268
  %v1270 = vsel %vm57, %v1251, 0.0
  %v1271 = vadd.f32 %v1269, %v1270
  %v1272 = vsel %vm57, %v1252, 0.0
  %v1273 = vadd.f32 %v1271, %v1272
  %v1274 = vsel %vm57, %v1253, 0.0
  %v1275 = vadd.f32 %v1273, %v1274
  %v1276 = vsel %vm57, %v1254, 0.0
  %v1277 = vadd.f32 %v1275, %v1276
  %v1278 = vsel %vm57, %v1255, 0.0
  %v1279 = vadd.f32 %v1277, %v1278
  %v1280 = vsel %vm57, %v1256, 0.0
  %v1281 = vadd.f32 %v1279, %v1280
  %v1282 = vsel %vm57, %v1257, 0.0
  %v1283 = vadd.f32 %v1281, %v1282
  %v1284 = vsel %vm57, %v1258, 0.0
  %v1285 = vadd.f32 %v1283, %v1284
  %v1286 = vsel %vm57, %v1259, 0.0
  %v1287 = vadd.f32 %v1285, %v1286
  %v1288 = vsel %vm57, %v1260, 0.0
  %v1289 = vadd.f32 %v1287, %v1288
  %v1290 = vsel %vm57, %v1261, 0.0
  %v1291 = vadd.f32 %v1289, %v1290
  %v1292 = vsel %vm57, %v1262, 0.0
  %v1293 = vadd.f32 %v1291, %v1292
  %v1294 = vrot.slane %v1293, 4
  %v1295 = vadd.f32 %v1293, %v1294
  %v1296 = vrot.slane %v1295, 2
  %v1297 = vadd.f32 %v1295, %v1296
  %v1298 = vrot.slane %v1297, 1
  %v1299 = vadd.f32 %v1297, %v1298
  %v1300 = vmul.f32 %v1299, %v95
  %v1301 = vmul.f32 %v1247, %v1247
  %v1302 = vmul.f32 %v1248, %v1248
  %v1303 = vmul.f32 %v1249, %v1249
  %v1304 = vmul.f32 %v1250, %v1250
  %v1305 = vmul.f32 %v1251, %v1251
  %v1306 = vmul.f32 %v1252, %v1252
  %v1307 = vmul.f32 %v1253, %v1253
  %v1308 = vmul.f32 %v1254, %v1254
  %v1309 = vmul.f32 %v1255, %v1255
  %v1310 = vmul.f32 %v1256, %v1256
  %v1311 = vmul.f32 %v1257, %v1257
  %v1312 = vmul.f32 %v1258, %v1258
  %v1313 = vmul.f32 %v1259, %v1259
  %v1314 = vmul.f32 %v1260, %v1260
  %v1315 = vmul.f32 %v1261, %v1261
  %v1316 = vmul.f32 %v1262, %v1262
  %v1317 = vsel %vm57, %v1301, 0.0
  %v1318 = vsel %vm57, %v1302, 0.0
  %v1319 = vadd.f32 %v1317, %v1318
  %v1320 = vsel %vm57, %v1303, 0.0
  %v1321 = vadd.f32 %v1319, %v1320
  %v1322 = vsel %vm57, %v1304, 0.0
  %v1323 = vadd.f32 %v1321, %v1322
  %v1324 = vsel %vm57, %v1305, 0.0
  %v1325 = vadd.f32 %v1323, %v1324
  %v1326 = vsel %vm57, %v1306, 0.0
  %v1327 = vadd.f32 %v1325, %v1326
  %v1328 = vsel %vm57, %v1307, 0.0
  %v1329 = vadd.f32 %v1327, %v1328
  %v1330 = vsel %vm57, %v1308, 0.0
  %v1331 = vadd.f32 %v1329, %v1330
  %v1332 = vsel %vm57, %v1309, 0.0
  %v1333 = vadd.f32 %v1331, %v1332
  %v1334 = vsel %vm57, %v1310, 0.0
  %v1335 = vadd.f32 %v1333, %v1334
  %v1336 = vsel %vm57, %v1311, 0.0
  %v1337 = vadd.f32 %v1335, %v1336
  %v1338 = vsel %vm57, %v1312, 0.0
  %v1339 = vadd.f32 %v1337, %v1338
  %v1340 = vsel %vm57, %v1313, 0.0
  %v1341 = vadd.f32 %v1339, %v1340
  %v1342 = vsel %vm57, %v1314, 0.0
  %v1343 = vadd.f32 %v1341, %v1342
  %v1344 = vsel %vm57, %v1315, 0.0
  %v1345 = vadd.f32 %v1343, %v1344
  %v1346 = vsel %vm57, %v1316, 0.0
  %v1347 = vadd.f32 %v1345, %v1346
  %v1348 = vrot.slane %v1347, 4
  %v1349 = vadd.f32 %v1347, %v1348
  %v1350 = vrot.slane %v1349, 2
  %v1351 = vadd.f32 %v1349, %v1350
  %v1352 = vrot.slane %v1351, 1
  %v1353 = vadd.f32 %v1351, %v1352
  %v1354 = vmul.f32 %v1353, %v95
  %v1355 = vmul.f32 %v1300, %v1300
  %v1356 = vsub.f32 %v1354, %v1355
  %v1357 = vmax.f32 %v1356, 0.0
  %v1358 = vadd.f32 %v1357, 1e-05
  %v1359 = vrsqrt.pop %v1358
  %v1360 = vsub.f32 %v1247, %v1300
  %v1361 = vsub.f32 %v1248, %v1300
  %v1362 = vsub.f32 %v1249, %v1300
  %v1363 = vsub.f32 %v1250, %v1300
  %v1364 = vsub.f32 %v1251, %v1300
  %v1365 = vsub.f32 %v1252, %v1300
  %v1366 = vsub.f32 %v1253, %v1300
  %v1367 = vsub.f32 %v1254, %v1300
  %v1368 = vsub.f32 %v1255, %v1300
  %v1369 = vsub.f32 %v1256, %v1300
  %v1370 = vsub.f32 %v1257, %v1300
  %v1371 = vsub.f32 %v1258, %v1300
  %v1372 = vsub.f32 %v1259, %v1300
  %v1373 = vsub.f32 %v1260, %v1300
  %v1374 = vsub.f32 %v1261, %v1300
  %v1375 = vsub.f32 %v1262, %v1300
  %v1376 = vmul.f32 %v1360, %v1359
  %v1377 = vmul.f32 %v1361, %v1359
  %v1378 = vmul.f32 %v1362, %v1359
  %v1379 = vmul.f32 %v1363, %v1359
  %v1380 = vmul.f32 %v1364, %v1359
  %v1381 = vmul.f32 %v1365, %v1359
  %v1382 = vmul.f32 %v1366, %v1359
  %v1383 = vmul.f32 %v1367, %v1359
  %v1384 = vmul.f32 %v1368, %v1359
  %v1385 = vmul.f32 %v1369, %v1359
  %v1386 = vmul.f32 %v1370, %v1359
  %v1387 = vmul.f32 %v1371, %v1359
  %v1388 = vmul.f32 %v1372, %v1359
  %v1389 = vmul.f32 %v1373, %v1359
  %v1390 = vmul.f32 %v1374, %v1359
  %v1391 = vmul.f32 %v1375, %v1359
  %v1392 = vpack.c.bf16 %v1377, %v1376
  %v1393 = vpack.c.bf16 %v1379, %v1378
  %v1394 = vpack.c.bf16 %v1381, %v1380
  %v1395 = vpack.c.bf16 %v1383, %v1382
  %v1396 = vpack.c.bf16 %v1385, %v1384
  %v1397 = vpack.c.bf16 %v1387, %v1386
  %v1398 = vpack.c.bf16 %v1389, %v1388
  %v1399 = vpack.c.bf16 %v1391, %v1390
  %v1400 = vld [vmem:[%s2] sm:$0xf]
  %v1401 = vld [vmem:[%s2 + $0x4] sm:$0xf]
  %v1402 = vld [vmem:[%s2 + $0x8] sm:$0xf]
  %v1403 = vld [vmem:[%s2 + $0xc] sm:$0xf]
  %v1404 = vld [vmem:[%s2 + $0x10] sm:$0xf]
  %v1410 = vunpack.c.l.b16 %v1400
  %v1411 = vunpack.c.l.b16 %v1401
  %v1412 = vunpack.c.l.b16 %v1402
  %v1413 = vunpack.c.l.b16 %v1403
  %v1414 = vunpack.c.l.b16 %v1404
  %v1415 = vpack.c.b16 %v1411, %v1410
  %v1416 = vpack.c.b16 %v1413, %v1412
  %v1417 = vpack.c.b16 %v1414, %v1414
  %v1421 = vsel %vm240, %v1417, 0
  %1423 = vmatprep.subr.bf16.mxu0 0
  %1424 = vmatpush1.bf16.msra.mxu0 0
  %1425 = vmatprep.subr.bf16.mxu0 0
  %1426 = vmatpush1.bf16.msra.mxu0 0
  %1427 = vmatprep.subr.bf16.mxu0 0
  %1428 = vmatpush1.bf16.msra.mxu0 0
  %1429 = vmatprep.subr.bf16.mxu0 0
  %1430 = vmatpush1.bf16.msra.mxu0 0
  %1431 = vmatprep.subr.bf16.mxu0 0
  %1432 = vmatpush1.bf16.msra.mxu0 0
  %1433 = vmatprep.subr.bf16.mxu0 0
  %1434 = vmatpush1.bf16.msra.mxu0 %v1421
  %1435 = vmatprep.subr.bf16.mxu0 0
  %1436 = vmatpush1.bf16.msra.mxu0 %v1416
  %1437 = vmatprep.subr.bf16.mxu0 0
  %1438 = vmatpush1.bf16.msra.mxu0 %v1415
  %1439 = vmatprep.subr.bf16.mxu0 0
  %1440 = vmatpush2.bf16.msra.mxu0 0
  %1441 = vmatprep.subr.bf16.mxu0 0
  %1442 = vmatpush2.bf16.msra.mxu0 0
  %1443 = vmatprep.subr.bf16.mxu0 0
  %1444 = vmatpush2.bf16.msra.mxu0 0
  %1445 = vmatprep.subr.bf16.mxu0 0
  %1446 = vmatpush2.bf16.msra.mxu0 0
  %1447 = vmatprep.subr.bf16.mxu0 0
  %1448 = vmatpush2.bf16.msra.mxu0 0
  %1449 = vmatprep.subr.bf16.mxu0 0
  %1450 = vmatpush2.bf16.msra.mxu0 0
  %1451 = vmatprep.subr.bf16.mxu0 0
  %1452 = vmatpush2.bf16.msra.mxu0 0
  %1453 = vmatprep.subr.bf16.mxu0 0
  %1454 = vmatpush2.bf16.msra.mxu0 0
  %1455 = vmatprep.mubr.bf16.mxu0 0
  %1456 = vmatmul.mubr.bf16.gmra.mxu0 %v217
  %v1457 = vpop.f32.mrf.mxu0
  %v1458 = vadd.f32 0.0, %v1457
  %v1459 = vpop.f32.mrf.mxu0
  %v1460 = vpop.f32.mrf.mxu0
  %v1461 = vadd.f32 0.0, %v1460
  %v1462 = vpop.f32.mrf.mxu0
  %1463 = vmatprep.mubr.bf16.mxu0 0
  %1464 = vmatmul.mubr.bf16.gmra.mxu0 %v220
  %v1465 = vpop.f32.mrf.mxu0
  %v1466 = vadd.f32 0.0, %v1465
  %v1467 = vpop.f32.mrf.mxu0
  %v1468 = vpop.f32.mrf.mxu0
  %v1469 = vadd.f32 0.0, %v1468
  %v1470 = vpop.f32.mrf.mxu0
  %1471 = vmatprep.mubr.bf16.mxu0 0
  %1472 = vmatmul.mubr.bf16.gmra.mxu0 %v223
  %v1473 = vpop.f32.mrf.mxu0
  %v1474 = vadd.f32 0.0, %v1473
  %v1475 = vpop.f32.mrf.mxu0
  %v1476 = vpop.f32.mrf.mxu0
  %v1477 = vadd.f32 0.0, %v1476
  %v1478 = vpop.f32.mrf.mxu0
  %1479 = vmatprep.mubr.bf16.mxu0 0
  %1480 = vmatmul.mubr.bf16.gmra.mxu0 %v226
  %v1481 = vpop.f32.mrf.mxu0
  %v1482 = vadd.f32 0.0, %v1481
  %v1483 = vpop.f32.mrf.mxu0
  %v1484 = vpop.f32.mrf.mxu0
  %v1485 = vadd.f32 0.0, %v1484
  %v1486 = vpop.f32.mrf.mxu0
  %1487 = vmatprep.mubr.bf16.mxu0 0
  %1488 = vmatmul.mubr.bf16.gmra.mxu0 %v229
  %v1489 = vpop.f32.mrf.mxu0
  %v1490 = vadd.f32 0.0, %v1489
  %v1491 = vpop.f32.mrf.mxu0
  %v1492 = vpop.f32.mrf.mxu0
  %v1493 = vadd.f32 0.0, %v1492
  %v1494 = vpop.f32.mrf.mxu0
  %1495 = vmatprep.mubr.bf16.mxu0 0
  %1496 = vmatmul.mubr.bf16.gmra.mxu0 %v232
  %v1497 = vpop.f32.mrf.mxu0
  %v1498 = vadd.f32 0.0, %v1497
  %v1499 = vpop.f32.mrf.mxu0
  %v1500 = vpop.f32.mrf.mxu0
  %v1501 = vadd.f32 0.0, %v1500
  %v1502 = vpop.f32.mrf.mxu0
  %1503 = vmatprep.mubr.bf16.mxu0 0
  %1504 = vmatmul.mubr.bf16.gmra.mxu0 %v235
  %v1505 = vpop.f32.mrf.mxu0
  %v1506 = vadd.f32 0.0, %v1505
  %v1507 = vpop.f32.mrf.mxu0
  %v1508 = vpop.f32.mrf.mxu0
  %v1509 = vadd.f32 0.0, %v1508
  %v1510 = vpop.f32.mrf.mxu0
  %1511 = vmatprep.mubr.bf16.mxu0 0
  %1512 = vmatmul.mubr.bf16.gmra.mxu0 %v238
  %v1513 = vpop.f32.mrf.mxu0
  %v1514 = vadd.f32 0.0, %v1513
  %v1515 = vpop.f32.mrf.mxu0
  %v1516 = vpop.f32.mrf.mxu0
  %v1517 = vadd.f32 0.0, %v1516
  %v1518 = vpop.f32.mrf.mxu0
  %1519 = vdwg.mxu0
  %vm1520 = vcmask 261120
  %v1521 = vsel %vm1520, %v1458, 0.0
  %v1522 = vsel %vm1520, %v1461, 0.0
  %v1523 = vadd.f32 %v1521, %v1522
  %v1524 = vsel %vm1520, %v1466, 0.0
  %v1525 = vadd.f32 %v1523, %v1524
  %v1526 = vsel %vm1520, %v1469, 0.0
  %v1527 = vadd.f32 %v1525, %v1526
  %v1528 = vsel %vm1520, %v1474, 0.0
  %v1529 = vadd.f32 %v1527, %v1528
  %v1530 = vsel %vm1520, %v1477, 0.0
  %v1531 = vadd.f32 %v1529, %v1530
  %v1532 = vsel %vm1520, %v1482, 0.0
  %v1533 = vadd.f32 %v1531, %v1532
  %v1534 = vsel %vm1520, %v1485, 0.0
  %v1535 = vadd.f32 %v1533, %v1534
  %v1536 = vsel %vm1520, %v1490, 0.0
  %v1537 = vadd.f32 %v1535, %v1536
  %v1538 = vsel %vm1520, %v1493, 0.0
  %v1539 = vadd.f32 %v1537, %v1538
  %v1540 = vsel %vm1520, %v1498, 0.0
  %v1541 = vadd.f32 %v1539, %v1540
  %v1542 = vsel %vm1520, %v1501, 0.0
  %v1543 = vadd.f32 %v1541, %v1542
  %v1544 = vsel %vm1520, %v1506, 0.0
  %v1545 = vadd.f32 %v1543, %v1544
  %v1546 = vsel %vm1520, %v1509, 0.0
  %v1547 = vadd.f32 %v1545, %v1546
  %v1548 = vsel %vm1520, %v1514, 0.0
  %v1549 = vadd.f32 %v1547, %v1548
  %v1550 = vsel %vm1520, %v1517, 0.0
  %v1551 = vadd.f32 %v1549, %v1550
  %v1552 = vrot.slane %v1551, 4
  %v1553 = vadd.f32 %v1551, %v1552
  %v1554 = vrot.slane %v1553, 2
  %v1555 = vadd.f32 %v1553, %v1554
  %v1556 = vrot.slane %v1555, 1
  %v1557 = vadd.f32 %v1555, %v1556
  %v1558 = vmul.f32 %v1557, %v95
  %v1559 = vmul.f32 %v1458, %v1458
  %v1560 = vmul.f32 %v1461, %v1461
  %v1561 = vmul.f32 %v1466, %v1466
  %v1562 = vmul.f32 %v1469, %v1469
  %v1563 = vmul.f32 %v1474, %v1474
  %v1564 = vmul.f32 %v1477, %v1477
  %v1565 = vmul.f32 %v1482, %v1482
  %v1566 = vmul.f32 %v1485, %v1485
  %v1567 = vmul.f32 %v1490, %v1490
  %v1568 = vmul.f32 %v1493, %v1493
  %v1569 = vmul.f32 %v1498, %v1498
  %v1570 = vmul.f32 %v1501, %v1501
  %v1571 = vmul.f32 %v1506, %v1506
  %v1572 = vmul.f32 %v1509, %v1509
  %v1573 = vmul.f32 %v1514, %v1514
  %v1574 = vmul.f32 %v1517, %v1517
  %v1575 = vsel %vm1520, %v1559, 0.0
  %v1576 = vsel %vm1520, %v1560, 0.0
  %v1577 = vadd.f32 %v1575, %v1576
  %v1578 = vsel %vm1520, %v1561, 0.0
  %v1579 = vadd.f32 %v1577, %v1578
  %v1580 = vsel %vm1520, %v1562, 0.0
  %v1581 = vadd.f32 %v1579, %v1580
  %v1582 = vsel %vm1520, %v1563, 0.0
  %v1583 = vadd.f32 %v1581, %v1582
  %v1584 = vsel %vm1520, %v1564, 0.0
  %v1585 = vadd.f32 %v1583, %v1584
  %v1586 = vsel %vm1520, %v1565, 0.0
  %v1587 = vadd.f32 %v1585, %v1586
  %v1588 = vsel %vm1520, %v1566, 0.0
  %v1589 = vadd.f32 %v1587, %v1588
  %v1590 = vsel %vm1520, %v1567, 0.0
  %v1591 = vadd.f32 %v1589, %v1590
  %v1592 = vsel %vm1520, %v1568, 0.0
  %v1593 = vadd.f32 %v1591, %v1592
  %v1594 = vsel %vm1520, %v1569, 0.0
  %v1595 = vadd.f32 %v1593, %v1594
  %v1596 = vsel %vm1520, %v1570, 0.0
  %v1597 = vadd.f32 %v1595, %v1596
  %v1598 = vsel %vm1520, %v1571, 0.0
  %v1599 = vadd.f32 %v1597, %v1598
  %v1600 = vsel %vm1520, %v1572, 0.0
  %v1601 = vadd.f32 %v1599, %v1600
  %v1602 = vsel %vm1520, %v1573, 0.0
  %v1603 = vadd.f32 %v1601, %v1602
  %v1604 = vsel %vm1520, %v1574, 0.0
  %v1605 = vadd.f32 %v1603, %v1604
  %v1606 = vrot.slane %v1605, 4
  %v1607 = vadd.f32 %v1605, %v1606
  %v1608 = vrot.slane %v1607, 2
  %v1609 = vadd.f32 %v1607, %v1608
  %v1610 = vrot.slane %v1609, 1
  %v1611 = vadd.f32 %v1609, %v1610
  %v1612 = vmul.f32 %v1611, %v95
  %v1613 = vmul.f32 %v1558, %v1558
  %v1614 = vsub.f32 %v1612, %v1613
  %v1615 = vmax.f32 %v1614, 0.0
  %v1616 = vadd.f32 %v1615, 1e-05
  %v1617 = vrsqrt.pop %v1616
  %v1618 = vsub.f32 %v1458, %v1558
  %v1619 = vsub.f32 %v1461, %v1558
  %v1620 = vsub.f32 %v1466, %v1558
  %v1621 = vsub.f32 %v1469, %v1558
  %v1622 = vsub.f32 %v1474, %v1558
  %v1623 = vsub.f32 %v1477, %v1558
  %v1624 = vsub.f32 %v1482, %v1558
  %v1625 = vsub.f32 %v1485, %v1558
  %v1626 = vsub.f32 %v1490, %v1558
  %v1627 = vsub.f32 %v1493, %v1558
  %v1628 = vsub.f32 %v1498, %v1558
  %v1629 = vsub.f32 %v1501, %v1558
  %v1630 = vsub.f32 %v1506, %v1558
  %v1631 = vsub.f32 %v1509, %v1558
  %v1632 = vsub.f32 %v1514, %v1558
  %v1633 = vsub.f32 %v1517, %v1558
  %v1634 = vmul.f32 %v1618, %v1617
  %v1635 = vmul.f32 %v1619, %v1617
  %v1636 = vmul.f32 %v1620, %v1617
  %v1637 = vmul.f32 %v1621, %v1617
  %v1638 = vmul.f32 %v1622, %v1617
  %v1639 = vmul.f32 %v1623, %v1617
  %v1640 = vmul.f32 %v1624, %v1617
  %v1641 = vmul.f32 %v1625, %v1617
  %v1642 = vmul.f32 %v1626, %v1617
  %v1643 = vmul.f32 %v1627, %v1617
  %v1644 = vmul.f32 %v1628, %v1617
  %v1645 = vmul.f32 %v1629, %v1617
  %v1646 = vmul.f32 %v1630, %v1617
  %v1647 = vmul.f32 %v1631, %v1617
  %v1648 = vmul.f32 %v1632, %v1617
  %v1649 = vmul.f32 %v1633, %v1617
  %v1650 = vpack.c.bf16 %v1635, %v1634
  %v1651 = vpack.c.bf16 %v1637, %v1636
  %v1652 = vpack.c.bf16 %v1639, %v1638
  %v1653 = vpack.c.bf16 %v1641, %v1640
  %v1654 = vpack.c.bf16 %v1643, %v1642
  %v1655 = vpack.c.bf16 %v1645, %v1644
  %v1656 = vpack.c.bf16 %v1647, %v1646
  %v1657 = vpack.c.bf16 %v1649, %v1648
  %v1658 = vmax.bf16 %v1650, 0
  %v1659 = vmax.bf16 %v1651, 0
  %v1660 = vmax.bf16 %v1652, 0
  %v1661 = vmax.bf16 %v1653, 0
  %v1662 = vmax.bf16 %v1654, 0
  %v1663 = vmax.bf16 %v1655, 0
  %v1664 = vmax.bf16 %v1656, 0
  %v1665 = vmax.bf16 %v1657, 0
  %v1666 = vld [vmem:[%s3] sm:$0xf]
  %v1667 = vld [vmem:[%s3 + $0x4] sm:$0xf]
  %v1668 = vld [vmem:[%s3 + $0x8] sm:$0xf]
  %v1669 = vld [vmem:[%s3 + $0xc] sm:$0xf]
  %v1674 = vunpack.c.l.b16 %v1666
  %v1675 = vunpack.c.l.b16 %v1667
  %v1676 = vunpack.c.l.b16 %v1668
  %v1677 = vunpack.c.l.b16 %v1669
  %v1678 = vpack.c.b16 %v1675, %v1674
  %v1679 = vpack.c.b16 %v1677, %v1676
  %v1683 = vsel %vm1520, %v1658, 0
  %v1686 = vsel %vm1520, %v1659, 0
  %v1689 = vsel %vm1520, %v1660, 0
  %v1692 = vsel %vm1520, %v1661, 0
  %v1695 = vsel %vm1520, %v1662, 0
  %v1698 = vsel %vm1520, %v1663, 0
  %v1701 = vsel %vm1520, %v1664, 0
  %v1704 = vsel %vm1520, %v1665, 0
  %1706 = vmatprep.subr.bf16.mxu0 0
  %1707 = vmatpush1.bf16.msra.mxu0 0
  %1708 = vmatprep.subr.bf16.mxu0 0
  %1709 = vmatpush1.bf16.msra.mxu0 0
  %1710 = vmatprep.subr.bf16.mxu0 0
  %1711 = vmatpush1.bf16.msra.mxu0 0
  %1712 = vmatprep.subr.bf16.mxu0 0
  %1713 = vmatpush1.bf16.msra.mxu0 0
  %1714 = vmatprep.subr.bf16.mxu0 0
  %1715 = vmatpush1.bf16.msra.mxu0 0
  %1716 = vmatprep.subr.bf16.mxu0 0
  %1717 = vmatpush1.bf16.msra.mxu0 0
  %1718 = vmatprep.subr.bf16.mxu0 0
  %1719 = vmatpush1.bf16.msra.mxu0 %v1679
  %1720 = vmatprep.subr.bf16.mxu0 0
  %1721 = vmatpush1.bf16.msra.mxu0 %v1678
  %1722 = vmatprep.subr.bf16.mxu0 0
  %1723 = vmatpush2.bf16.msra.mxu0 0
  %1724 = vmatprep.subr.bf16.mxu0 0
  %1725 = vmatpush2.bf16.msra.mxu0 0
  %1726 = vmatprep.subr.bf16.mxu0 0
  %1727 = vmatpush2.bf16.msra.mxu0 0
  %1728 = vmatprep.subr.bf16.mxu0 0
  %1729 = vmatpush2.bf16.msra.mxu0 0
  %1730 = vmatprep.subr.bf16.mxu0 0
  %1731 = vmatpush2.bf16.msra.mxu0 0
  %1732 = vmatprep.subr.bf16.mxu0 0
  %1733 = vmatpush2.bf16.msra.mxu0 0
  %1734 = vmatprep.subr.bf16.mxu0 0
  %1735 = vmatpush2.bf16.msra.mxu0 0
  %1736 = vmatprep.subr.bf16.mxu0 0
  %1737 = vmatpush2.bf16.msra.mxu0 0
  %1738 = vmatprep.mubr.bf16.mxu0 0
  %1739 = vmatmul.mubr.bf16.gmra.mxu0 %v1683
  %v1740 = vpop.f32.mrf.mxu0
  %v1741 = vadd.f32 0.0, %v1740
  %v1742 = vpop.f32.mrf.mxu0
  %v1743 = vpop.f32.mrf.mxu0
  %v1744 = vadd.f32 0.0, %v1743
  %v1745 = vpop.f32.mrf.mxu0
  %1746 = vmatprep.mubr.bf16.mxu0 0
  %1747 = vmatmul.mubr.bf16.gmra.mxu0 %v1686
  %v1748 = vpop.f32.mrf.mxu0
  %v1749 = vadd.f32 0.0, %v1748
  %v1750 = vpop.f32.mrf.mxu0
  %v1751 = vpop.f32.mrf.mxu0
  %v1752 = vadd.f32 0.0, %v1751
  %v1753 = vpop.f32.mrf.mxu0
  %1754 = vmatprep.mubr.bf16.mxu0 0
  %1755 = vmatmul.mubr.bf16.gmra.mxu0 %v1689
  %v1756 = vpop.f32.mrf.mxu0
  %v1757 = vadd.f32 0.0, %v1756
  %v1758 = vpop.f32.mrf.mxu0
  %v1759 = vpop.f32.mrf.mxu0
  %v1760 = vadd.f32 0.0, %v1759
  %v1761 = vpop.f32.mrf.mxu0
  %1762 = vmatprep.mubr.bf16.mxu0 0
  %1763 = vmatmul.mubr.bf16.gmra.mxu0 %v1692
  %v1764 = vpop.f32.mrf.mxu0
  %v1765 = vadd.f32 0.0, %v1764
  %v1766 = vpop.f32.mrf.mxu0
  %v1767 = vpop.f32.mrf.mxu0
  %v1768 = vadd.f32 0.0, %v1767
  %v1769 = vpop.f32.mrf.mxu0
  %1770 = vmatprep.mubr.bf16.mxu0 0
  %1771 = vmatmul.mubr.bf16.gmra.mxu0 %v1695
  %v1772 = vpop.f32.mrf.mxu0
  %v1773 = vadd.f32 0.0, %v1772
  %v1774 = vpop.f32.mrf.mxu0
  %v1775 = vpop.f32.mrf.mxu0
  %v1776 = vadd.f32 0.0, %v1775
  %v1777 = vpop.f32.mrf.mxu0
  %1778 = vmatprep.mubr.bf16.mxu0 0
  %1779 = vmatmul.mubr.bf16.gmra.mxu0 %v1698
  %v1780 = vpop.f32.mrf.mxu0
  %v1781 = vadd.f32 0.0, %v1780
  %v1782 = vpop.f32.mrf.mxu0
  %v1783 = vpop.f32.mrf.mxu0
  %v1784 = vadd.f32 0.0, %v1783
  %v1785 = vpop.f32.mrf.mxu0
  %1786 = vmatprep.mubr.bf16.mxu0 0
  %1787 = vmatmul.mubr.bf16.gmra.mxu0 %v1701
  %v1788 = vpop.f32.mrf.mxu0
  %v1789 = vadd.f32 0.0, %v1788
  %v1790 = vpop.f32.mrf.mxu0
  %v1791 = vpop.f32.mrf.mxu0
  %v1792 = vadd.f32 0.0, %v1791
  %v1793 = vpop.f32.mrf.mxu0
  %1794 = vmatprep.mubr.bf16.mxu0 0
  %1795 = vmatmul.mubr.bf16.gmra.mxu0 %v1704
  %v1796 = vpop.f32.mrf.mxu0
  %v1797 = vadd.f32 0.0, %v1796
  %v1798 = vpop.f32.mrf.mxu0
  %v1799 = vpop.f32.mrf.mxu0
  %v1800 = vadd.f32 0.0, %v1799
  %v1801 = vpop.f32.mrf.mxu0
  %1802 = vdwg.mxu0
  %vm1803 = vcmask 130048
  %v1804 = vsel %vm1803, %v1741, 0.0
  %v1805 = vsel %vm1803, %v1744, 0.0
  %v1806 = vadd.f32 %v1804, %v1805
  %v1807 = vsel %vm1803, %v1749, 0.0
  %v1808 = vadd.f32 %v1806, %v1807
  %v1809 = vsel %vm1803, %v1752, 0.0
  %v1810 = vadd.f32 %v1808, %v1809
  %v1811 = vsel %vm1803, %v1757, 0.0
  %v1812 = vadd.f32 %v1810, %v1811
  %v1813 = vsel %vm1803, %v1760, 0.0
  %v1814 = vadd.f32 %v1812, %v1813
  %v1815 = vsel %vm1803, %v1765, 0.0
  %v1816 = vadd.f32 %v1814, %v1815
  %v1817 = vsel %vm1803, %v1768, 0.0
  %v1818 = vadd.f32 %v1816, %v1817
  %v1819 = vsel %vm1803, %v1773, 0.0
  %v1820 = vadd.f32 %v1818, %v1819
  %v1821 = vsel %vm1803, %v1776, 0.0
  %v1822 = vadd.f32 %v1820, %v1821
  %v1823 = vsel %vm1803, %v1781, 0.0
  %v1824 = vadd.f32 %v1822, %v1823
  %v1825 = vsel %vm1803, %v1784, 0.0
  %v1826 = vadd.f32 %v1824, %v1825
  %v1827 = vsel %vm1803, %v1789, 0.0
  %v1828 = vadd.f32 %v1826, %v1827
  %v1829 = vsel %vm1803, %v1792, 0.0
  %v1830 = vadd.f32 %v1828, %v1829
  %v1831 = vsel %vm1803, %v1797, 0.0
  %v1832 = vadd.f32 %v1830, %v1831
  %v1833 = vsel %vm1803, %v1800, 0.0
  %v1834 = vadd.f32 %v1832, %v1833
  %v1835 = vrot.slane %v1834, 4
  %v1836 = vadd.f32 %v1834, %v1835
  %v1837 = vrot.slane %v1836, 2
  %v1838 = vadd.f32 %v1836, %v1837
  %v1839 = vrot.slane %v1838, 1
  %v1840 = vadd.f32 %v1838, %v1839
  %v1841 = vmul.f32 %v1840, %v95
  %v1842 = vmul.f32 %v1741, %v1741
  %v1843 = vmul.f32 %v1744, %v1744
  %v1844 = vmul.f32 %v1749, %v1749
  %v1845 = vmul.f32 %v1752, %v1752
  %v1846 = vmul.f32 %v1757, %v1757
  %v1847 = vmul.f32 %v1760, %v1760
  %v1848 = vmul.f32 %v1765, %v1765
  %v1849 = vmul.f32 %v1768, %v1768
  %v1850 = vmul.f32 %v1773, %v1773
  %v1851 = vmul.f32 %v1776, %v1776
  %v1852 = vmul.f32 %v1781, %v1781
  %v1853 = vmul.f32 %v1784, %v1784
  %v1854 = vmul.f32 %v1789, %v1789
  %v1855 = vmul.f32 %v1792, %v1792
  %v1856 = vmul.f32 %v1797, %v1797
  %v1857 = vmul.f32 %v1800, %v1800
  %v1858 = vsel %vm1803, %v1842, 0.0
  %v1859 = vsel %vm1803, %v1843, 0.0
  %v1860 = vadd.f32 %v1858, %v1859
  %v1861 = vsel %vm1803, %v1844, 0.0
  %v1862 = vadd.f32 %v1860, %v1861
  %v1863 = vsel %vm1803, %v1845, 0.0
  %v1864 = vadd.f32 %v1862, %v1863
  %v1865 = vsel %vm1803, %v1846, 0.0
  %v1866 = vadd.f32 %v1864, %v1865
  %v1867 = vsel %vm1803, %v1847, 0.0
  %v1868 = vadd.f32 %v1866, %v1867
  %v1869 = vsel %vm1803, %v1848, 0.0
  %v1870 = vadd.f32 %v1868, %v1869
  %v1871 = vsel %vm1803, %v1849, 0.0
  %v1872 = vadd.f32 %v1870, %v1871
  %v1873 = vsel %vm1803, %v1850, 0.0
  %v1874 = vadd.f32 %v1872, %v1873
  %v1875 = vsel %vm1803, %v1851, 0.0
  %v1876 = vadd.f32 %v1874, %v1875
  %v1877 = vsel %vm1803, %v1852, 0.0
  %v1878 = vadd.f32 %v1876, %v1877
  %v1879 = vsel %vm1803, %v1853, 0.0
  %v1880 = vadd.f32 %v1878, %v1879
  %v1881 = vsel %vm1803, %v1854, 0.0
  %v1882 = vadd.f32 %v1880, %v1881
  %v1883 = vsel %vm1803, %v1855, 0.0
  %v1884 = vadd.f32 %v1882, %v1883
  %v1885 = vsel %vm1803, %v1856, 0.0
  %v1886 = vadd.f32 %v1884, %v1885
  %v1887 = vsel %vm1803, %v1857, 0.0
  %v1888 = vadd.f32 %v1886, %v1887
  %v1889 = vrot.slane %v1888, 4
  %v1890 = vadd.f32 %v1888, %v1889
  %v1891 = vrot.slane %v1890, 2
  %v1892 = vadd.f32 %v1890, %v1891
  %v1893 = vrot.slane %v1892, 1
  %v1894 = vadd.f32 %v1892, %v1893
  %v1895 = vmul.f32 %v1894, %v95
  %v1896 = vmul.f32 %v1841, %v1841
  %v1897 = vsub.f32 %v1895, %v1896
  %v1898 = vmax.f32 %v1897, 0.0
  %v1899 = vadd.f32 %v1898, 1e-05
  %v1900 = vrsqrt.pop %v1899
  %v1901 = vsub.f32 %v1741, %v1841
  %v1902 = vsub.f32 %v1744, %v1841
  %v1903 = vsub.f32 %v1749, %v1841
  %v1904 = vsub.f32 %v1752, %v1841
  %v1905 = vsub.f32 %v1757, %v1841
  %v1906 = vsub.f32 %v1760, %v1841
  %v1907 = vsub.f32 %v1765, %v1841
  %v1908 = vsub.f32 %v1768, %v1841
  %v1909 = vsub.f32 %v1773, %v1841
  %v1910 = vsub.f32 %v1776, %v1841
  %v1911 = vsub.f32 %v1781, %v1841
  %v1912 = vsub.f32 %v1784, %v1841
  %v1913 = vsub.f32 %v1789, %v1841
  %v1914 = vsub.f32 %v1792, %v1841
  %v1915 = vsub.f32 %v1797, %v1841
  %v1916 = vsub.f32 %v1800, %v1841
  %v1917 = vmul.f32 %v1901, %v1900
  %v1918 = vmul.f32 %v1902, %v1900
  %v1919 = vmul.f32 %v1903, %v1900
  %v1920 = vmul.f32 %v1904, %v1900
  %v1921 = vmul.f32 %v1905, %v1900
  %v1922 = vmul.f32 %v1906, %v1900
  %v1923 = vmul.f32 %v1907, %v1900
  %v1924 = vmul.f32 %v1908, %v1900
  %v1925 = vmul.f32 %v1909, %v1900
  %v1926 = vmul.f32 %v1910, %v1900
  %v1927 = vmul.f32 %v1911, %v1900
  %v1928 = vmul.f32 %v1912, %v1900
  %v1929 = vmul.f32 %v1913, %v1900
  %v1930 = vmul.f32 %v1914, %v1900
  %v1931 = vmul.f32 %v1915, %v1900
  %v1932 = vmul.f32 %v1916, %v1900
  %v1933 = vpack.c.bf16 %v1918, %v1917
  %v1934 = vpack.c.bf16 %v1920, %v1919
  %v1935 = vpack.c.bf16 %v1922, %v1921
  %v1936 = vpack.c.bf16 %v1924, %v1923
  %v1937 = vpack.c.bf16 %v1926, %v1925
  %v1938 = vpack.c.bf16 %v1928, %v1927
  %v1939 = vpack.c.bf16 %v1930, %v1929
  %v1940 = vpack.c.bf16 %v1932, %v1931
  %v1941 = vmax.bf16 %v1933, 0
  %v1942 = vmax.bf16 %v1934, 0
  %v1943 = vmax.bf16 %v1935, 0
  %v1944 = vmax.bf16 %v1936, 0
  %v1945 = vmax.bf16 %v1937, 0
  %v1946 = vmax.bf16 %v1938, 0
  %v1947 = vmax.bf16 %v1939, 0
  %v1948 = vmax.bf16 %v1940, 0
  %v1949 = vld [vmem:[%s4] sm:$0xf]
  %v1950 = vld [vmem:[%s4 + $0x4] sm:$0xf]
  %v1953 = vunpack.c.l.b16 %v1949
  %v1954 = vunpack.c.l.b16 %v1950
  %v1955 = vpack.c.b16 %v1954, %v1953
  %v1958 = vsel %vm1803, %v1941, 0
  %v1961 = vsel %vm1803, %v1942, 0
  %v1964 = vsel %vm1803, %v1943, 0
  %v1967 = vsel %vm1803, %v1944, 0
  %v1970 = vsel %vm1803, %v1945, 0
  %v1973 = vsel %vm1803, %v1946, 0
  %v1976 = vsel %vm1803, %v1947, 0
  %v1979 = vsel %vm1803, %v1948, 0
  %1981 = vmatprep.subr.bf16.mxu0 0
  %1982 = vmatpush1.bf16.msra.mxu0 0
  %1983 = vmatprep.subr.bf16.mxu0 0
  %1984 = vmatpush1.bf16.msra.mxu0 0
  %1985 = vmatprep.subr.bf16.mxu0 0
  %1986 = vmatpush1.bf16.msra.mxu0 0
  %1987 = vmatprep.subr.bf16.mxu0 0
  %1988 = vmatpush1.bf16.msra.mxu0 0
  %1989 = vmatprep.subr.bf16.mxu0 0
  %1990 = vmatpush1.bf16.msra.mxu0 0
  %1991 = vmatprep.subr.bf16.mxu0 0
  %1992 = vmatpush1.bf16.msra.mxu0 0
  %1993 = vmatprep.subr.bf16.mxu0 0
  %1994 = vmatpush1.bf16.msra.mxu0 0
  %1995 = vmatprep.subr.bf16.mxu0 0
  %1996 = vmatpush1.bf16.msra.mxu0 %v1955
  %1997 = vmatprep.subr.bf16.mxu0 0
  %1998 = vmatpush2.bf16.msra.mxu0 0
  %1999 = vmatprep.subr.bf16.mxu0 0
  %2000 = vmatpush2.bf16.msra.mxu0 0
  %2001 = vmatprep.subr.bf16.mxu0 0
  %2002 = vmatpush2.bf16.msra.mxu0 0
  %2003 = vmatprep.subr.bf16.mxu0 0
  %2004 = vmatpush2.bf16.msra.mxu0 0
  %2005 = vmatprep.subr.bf16.mxu0 0
  %2006 = vmatpush2.bf16.msra.mxu0 0
  %2007 = vmatprep.subr.bf16.mxu0 0
  %2008 = vmatpush2.bf16.msra.mxu0 0
  %2009 = vmatprep.subr.bf16.mxu0 0
  %2010 = vmatpush2.bf16.msra.mxu0 0
  %2011 = vmatprep.subr.bf16.mxu0 0
  %2012 = vmatpush2.bf16.msra.mxu0 0
  %2013 = vmatprep.mubr.bf16.mxu0 0
  %2014 = vmatmul.mubr.bf16.gmra.mxu0 %v1958
  %v2015 = vpop.f32.mrf.mxu0
  %v2016 = vadd.f32 0.0, %v2015
  %v2017 = vpop.f32.mrf.mxu0
  %v2018 = vpop.f32.mrf.mxu0
  %v2019 = vadd.f32 0.0, %v2018
  %v2020 = vpop.f32.mrf.mxu0
  %2021 = vmatprep.mubr.bf16.mxu0 0
  %2022 = vmatmul.mubr.bf16.gmra.mxu0 %v1961
  %v2023 = vpop.f32.mrf.mxu0
  %v2024 = vadd.f32 0.0, %v2023
  %v2025 = vpop.f32.mrf.mxu0
  %v2026 = vpop.f32.mrf.mxu0
  %v2027 = vadd.f32 0.0, %v2026
  %v2028 = vpop.f32.mrf.mxu0
  %2029 = vmatprep.mubr.bf16.mxu0 0
  %2030 = vmatmul.mubr.bf16.gmra.mxu0 %v1964
  %v2031 = vpop.f32.mrf.mxu0
  %v2032 = vadd.f32 0.0, %v2031
  %v2033 = vpop.f32.mrf.mxu0
  %v2034 = vpop.f32.mrf.mxu0
  %v2035 = vadd.f32 0.0, %v2034
  %v2036 = vpop.f32.mrf.mxu0
  %2037 = vmatprep.mubr.bf16.mxu0 0
  %2038 = vmatmul.mubr.bf16.gmra.mxu0 %v1967
  %v2039 = vpop.f32.mrf.mxu0
  %v2040 = vadd.f32 0.0, %v2039
  %v2041 = vpop.f32.mrf.mxu0
  %v2042 = vpop.f32.mrf.mxu0
  %v2043 = vadd.f32 0.0, %v2042
  %v2044 = vpop.f32.mrf.mxu0
  %2045 = vmatprep.mubr.bf16.mxu0 0
  %2046 = vmatmul.mubr.bf16.gmra.mxu0 %v1970
  %v2047 = vpop.f32.mrf.mxu0
  %v2048 = vadd.f32 0.0, %v2047
  %v2049 = vpop.f32.mrf.mxu0
  %v2050 = vpop.f32.mrf.mxu0
  %v2051 = vadd.f32 0.0, %v2050
  %v2052 = vpop.f32.mrf.mxu0
  %2053 = vmatprep.mubr.bf16.mxu0 0
  %2054 = vmatmul.mubr.bf16.gmra.mxu0 %v1973
  %v2055 = vpop.f32.mrf.mxu0
  %v2056 = vadd.f32 0.0, %v2055
  %v2057 = vpop.f32.mrf.mxu0
  %v2058 = vpop.f32.mrf.mxu0
  %v2059 = vadd.f32 0.0, %v2058
  %v2060 = vpop.f32.mrf.mxu0
  %2061 = vmatprep.mubr.bf16.mxu0 0
  %2062 = vmatmul.mubr.bf16.gmra.mxu0 %v1976
  %v2063 = vpop.f32.mrf.mxu0
  %v2064 = vadd.f32 0.0, %v2063
  %v2065 = vpop.f32.mrf.mxu0
  %v2066 = vpop.f32.mrf.mxu0
  %v2067 = vadd.f32 0.0, %v2066
  %v2068 = vpop.f32.mrf.mxu0
  %2069 = vmatprep.mubr.bf16.mxu0 0
  %2070 = vmatmul.mubr.bf16.gmra.mxu0 %v1979
  %v2071 = vpop.f32.mrf.mxu0
  %v2072 = vadd.f32 0.0, %v2071
  %v2073 = vpop.f32.mrf.mxu0
  %v2074 = vpop.f32.mrf.mxu0
  %v2075 = vadd.f32 0.0, %v2074
  %v2076 = vpop.f32.mrf.mxu0
  %2077 = vdwg.mxu0
  %2078 = vrot.lane.b32.xlu0 %v211, 125
  %v2079 = vpop.permute.xlu0 %2078
  %2080 = vrot.lane.b32.xlu0 %v212, 125
  %v2081 = vpop.permute.xlu0 %2080
  %2082 = vrot.lane.b32.xlu0 %v213, 125
  %v2083 = vpop.permute.xlu0 %2082
  %v2087 = vsel %vm57, %v1392, 0
  %v2090 = vsel %vm57, %v1393, 0
  %v2093 = vsel %vm57, %v1394, 0
  %v2096 = vsel %vm57, %v1395, 0
  %v2099 = vsel %vm57, %v1396, 0
  %v2102 = vsel %vm57, %v1397, 0
  %v2105 = vsel %vm57, %v1398, 0
  %v2108 = vsel %vm57, %v1399, 0
  %v2111 = vsel %vm240, %v2083, 0
  %2113 = vmatprep.subr.bf16.mxu0 0
  %2114 = vmatpush1.bf16.msra.mxu0 0
  %2115 = vmatprep.subr.bf16.mxu0 0
  %2116 = vmatpush1.bf16.msra.mxu0 0
  %2117 = vmatprep.subr.bf16.mxu0 0
  %2118 = vmatpush1.bf16.msra.mxu0 0
  %2119 = vmatprep.subr.bf16.mxu0 0
  %2120 = vmatpush1.bf16.msra.mxu0 0
  %2121 = vmatprep.subr.bf16.mxu0 0
  %2122 = vmatpush1.bf16.msra.mxu0 0
  %2123 = vmatprep.subr.bf16.mxu0 0
  %2124 = vmatpush1.bf16.msra.mxu0 %v2111
  %2125 = vmatprep.subr.bf16.mxu0 0
  %2126 = vmatpush1.bf16.msra.mxu0 %v2081
  %2127 = vmatprep.subr.bf16.mxu0 0
  %2128 = vmatpush1.bf16.msra.mxu0 %v2079
  %2129 = vmatprep.subr.bf16.mxu0 0
  %2130 = vmatpush2.bf16.msra.mxu0 0
  %2131 = vmatprep.subr.bf16.mxu0 0
  %2132 = vmatpush2.bf16.msra.mxu0 0
  %2133 = vmatprep.subr.bf16.mxu0 0
  %2134 = vmatpush2.bf16.msra.mxu0 0
  %2135 = vmatprep.subr.bf16.mxu0 0
  %2136 = vmatpush2.bf16.msra.mxu0 0
  %2137 = vmatprep.subr.bf16.mxu0 0
  %2138 = vmatpush2.bf16.msra.mxu0 0
  %2139 = vmatprep.subr.bf16.mxu0 0
  %2140 = vmatpush2.bf16.msra.mxu0 0
  %2141 = vmatprep.subr.bf16.mxu0 0
  %2142 = vmatpush2.bf16.msra.mxu0 0
  %2143 = vmatprep.subr.bf16.mxu0 0
  %2144 = vmatpush2.bf16.msra.mxu0 0
  %2145 = vmatprep.mubr.bf16.mxu0 0
  %2146 = vmatmul.mubr.bf16.gmra.mxu0 %v2087
  %v2147 = vpop.f32.mrf.mxu0
  %v2148 = vadd.f32 %v2016, %v2147
  %v2149 = vpop.f32.mrf.mxu0
  %v2150 = vpop.f32.mrf.mxu0
  %v2151 = vadd.f32 %v2019, %v2150
  %v2152 = vpop.f32.mrf.mxu0
  %2153 = vmatprep.mubr.bf16.mxu0 0
  %2154 = vmatmul.mubr.bf16.gmra.mxu0 %v2090
  %v2155 = vpop.f32.mrf.mxu0
  %v2156 = vadd.f32 %v2024, %v2155
  %v2157 = vpop.f32.mrf.mxu0
  %v2158 = vpop.f32.mrf.mxu0
  %v2159 = vadd.f32 %v2027, %v2158
  %v2160 = vpop.f32.mrf.mxu0
  %2161 = vmatprep.mubr.bf16.mxu0 0
  %2162 = vmatmul.mubr.bf16.gmra.mxu0 %v2093
  %v2163 = vpop.f32.mrf.mxu0
  %v2164 = vadd.f32 %v2032, %v2163
  %v2165 = vpop.f32.mrf.mxu0
  %v2166 = vpop.f32.mrf.mxu0
  %v2167 = vadd.f32 %v2035, %v2166
  %v2168 = vpop.f32.mrf.mxu0
  %2169 = vmatprep.mubr.bf16.mxu0 0
  %2170 = vmatmul.mubr.bf16.gmra.mxu0 %v2096
  %v2171 = vpop.f32.mrf.mxu0
  %v2172 = vadd.f32 %v2040, %v2171
  %v2173 = vpop.f32.mrf.mxu0
  %v2174 = vpop.f32.mrf.mxu0
  %v2175 = vadd.f32 %v2043, %v2174
  %v2176 = vpop.f32.mrf.mxu0
  %2177 = vmatprep.mubr.bf16.mxu0 0
  %2178 = vmatmul.mubr.bf16.gmra.mxu0 %v2099
  %v2179 = vpop.f32.mrf.mxu0
  %v2180 = vadd.f32 %v2048, %v2179
  %v2181 = vpop.f32.mrf.mxu0
  %v2182 = vpop.f32.mrf.mxu0
  %v2183 = vadd.f32 %v2051, %v2182
  %v2184 = vpop.f32.mrf.mxu0
  %2185 = vmatprep.mubr.bf16.mxu0 0
  %2186 = vmatmul.mubr.bf16.gmra.mxu0 %v2102
  %v2187 = vpop.f32.mrf.mxu0
  %v2188 = vadd.f32 %v2056, %v2187
  %v2189 = vpop.f32.mrf.mxu0
  %v2190 = vpop.f32.mrf.mxu0
  %v2191 = vadd.f32 %v2059, %v2190
  %v2192 = vpop.f32.mrf.mxu0
  %2193 = vmatprep.mubr.bf16.mxu0 0
  %2194 = vmatmul.mubr.bf16.gmra.mxu0 %v2105
  %v2195 = vpop.f32.mrf.mxu0
  %v2196 = vadd.f32 %v2064, %v2195
  %v2197 = vpop.f32.mrf.mxu0
  %v2198 = vpop.f32.mrf.mxu0
  %v2199 = vadd.f32 %v2067, %v2198
  %v2200 = vpop.f32.mrf.mxu0
  %2201 = vmatprep.mubr.bf16.mxu0 0
  %2202 = vmatmul.mubr.bf16.gmra.mxu0 %v2108
  %v2203 = vpop.f32.mrf.mxu0
  %v2204 = vadd.f32 %v2072, %v2203
  %v2205 = vpop.f32.mrf.mxu0
  %v2206 = vpop.f32.mrf.mxu0
  %v2207 = vadd.f32 %v2075, %v2206
  %v2208 = vpop.f32.mrf.mxu0
  %2209 = vdwg.mxu0
  %s2210 = sld [smem:[#allocation2]]
  %v2211 = vstv %s2210
  %v2212 = vadd.f32 %v2148, %v2211
  %v2213 = vadd.f32 %v2151, %v2211
  %v2214 = vadd.f32 %v2156, %v2211
  %v2215 = vadd.f32 %v2159, %v2211
  %v2216 = vadd.f32 %v2164, %v2211
  %v2217 = vadd.f32 %v2167, %v2211
  %v2218 = vadd.f32 %v2172, %v2211
  %v2219 = vadd.f32 %v2175, %v2211
  %v2220 = vadd.f32 %v2180, %v2211
  %v2221 = vadd.f32 %v2183, %v2211
  %v2222 = vadd.f32 %v2188, %v2211
  %v2223 = vadd.f32 %v2191, %v2211
  %v2224 = vadd.f32 %v2196, %v2211
  %v2225 = vadd.f32 %v2199, %v2211
  %v2226 = vadd.f32 %v2204, %v2211
  %v2227 = vadd.f32 %v2207, %v2211
  %v2228 = vxor.u32 %v2212, 2147483648
  %v2229 = vxor.u32 %v2213, 2147483648
  %v2230 = vxor.u32 %v2214, 2147483648
  %v2231 = vxor.u32 %v2215, 2147483648
  %v2232 = vxor.u32 %v2216, 2147483648
  %v2233 = vxor.u32 %v2217, 2147483648
  %v2234 = vxor.u32 %v2218, 2147483648
  %v2235 = vxor.u32 %v2219, 2147483648
  %v2236 = vxor.u32 %v2220, 2147483648
  %v2237 = vxor.u32 %v2221, 2147483648
  %v2238 = vxor.u32 %v2222, 2147483648
  %v2239 = vxor.u32 %v2223, 2147483648
  %v2240 = vxor.u32 %v2224, 2147483648
  %v2241 = vxor.u32 %v2225, 2147483648
  %v2242 = vxor.u32 %v2226, 2147483648
  %v2243 = vxor.u32 %v2227, 2147483648
  %v2244 = vmul.f32 %v2228, 1.442695
  %v2245 = vpow.pop %v2244
  %v2246 = vmul.f32 %v2229, 1.442695
  %v2247 = vpow.pop %v2246
  %v2248 = vmul.f32 %v2230, 1.442695
  %v2249 = vpow.pop %v2248
  %v2250 = vmul.f32 %v2231, 1.442695
  %v2251 = vpow.pop %v2250
  %v2252 = vmul.f32 %v2232, 1.442695
  %v2253 = vpow.pop %v2252
  %v2254 = vmul.f32 %v2233, 1.442695
  %v2255 = vpow.pop %v2254
  %v2256 = vmul.f32 %v2234, 1.442695
  %v2257 = vpow.pop %v2256
  %v2258 = vmul.f32 %v2235, 1.442695
  %v2259 = vpow.pop %v2258
  %v2260 = vmul.f32 %v2236, 1.442695
  %v2261 = vpow.pop %v2260
  %v2262 = vmul.f32 %v2237, 1.442695
  %v2263 = vpow.pop %v2262
  %v2264 = vmul.f32 %v2238, 1.442695
  %v2265 = vpow.pop %v2264
  %v2266 = vmul.f32 %v2239, 1.442695
  %v2267 = vpow.pop %v2266
  %v2268 = vmul.f32 %v2240, 1.442695
  %v2269 = vpow.pop %v2268
  %v2270 = vmul.f32 %v2241, 1.442695
  %v2271 = vpow.pop %v2270
  %v2272 = vmul.f32 %v2242, 1.442695
  %v2273 = vpow.pop %v2272
  %v2274 = vmul.f32 %v2243, 1.442695
  %v2275 = vpow.pop %v2274
  %v2276 = vadd.f32 %v2245, 1.0
  %v2277 = vadd.f32 %v2247, 1.0
  %v2278 = vadd.f32 %v2249, 1.0
  %v2279 = vadd.f32 %v2251, 1.0
  %v2280 = vadd.f32 %v2253, 1.0
  %v2281 = vadd.f32 %v2255, 1.0
  %v2282 = vadd.f32 %v2257, 1.0
  %v2283 = vadd.f32 %v2259, 1.0
  %v2284 = vadd.f32 %v2261, 1.0
  %v2285 = vadd.f32 %v2263, 1.0
  %v2286 = vadd.f32 %v2265, 1.0
  %v2287 = vadd.f32 %v2267, 1.0
  %v2288 = vadd.f32 %v2269, 1.0
  %v2289 = vadd.f32 %v2271, 1.0
  %v2290 = vadd.f32 %v2273, 1.0
  %v2291 = vadd.f32 %v2275, 1.0
  %v2292 = vrcp.pop %v2276
  %v2293 = vmul.f32 1.0, %v2292
  %v2294 = vrcp.pop %v2277
  %v2295 = vmul.f32 1.0, %v2294
  %v2296 = vrcp.pop %v2278
  %v2297 = vmul.f32 1.0, %v2296
  %v2298 = vrcp.pop %v2279
  %v2299 = vmul.f32 1.0, %v2298
  %v2300 = vrcp.pop %v2280
  %v2301 = vmul.f32 1.0, %v2300
  %v2302 = vrcp.pop %v2281
  %v2303 = vmul.f32 1.0, %v2302
  %v2304 = vrcp.pop %v2282
  %v2305 = vmul.f32 1.0, %v2304
  %v2306 = vrcp.pop %v2283
  %v2307 = vmul.f32 1.0, %v2306
  %v2308 = vrcp.pop %v2284
  %v2309 = vmul.f32 1.0, %v2308
  %v2310 = vrcp.pop %v2285
  %v2311 = vmul.f32 1.0, %v2310
  %v2312 = vrcp.pop %v2286
  %v2313 = vmul.f32 1.0, %v2312
  %v2314 = vrcp.pop %v2287
  %v2315 = vmul.f32 1.0, %v2314
  %v2316 = vrcp.pop %v2288
  %v2317 = vmul.f32 1.0, %v2316
  %v2318 = vrcp.pop %v2289
  %v2319 = vmul.f32 1.0, %v2318
  %v2320 = vrcp.pop %v2290
  %v2321 = vmul.f32 1.0, %v2320
  %v2322 = vrcp.pop %v2291
  %v2323 = vmul.f32 1.0, %v2322
  %vm2324 = vcmask 7168
  %2325 = vst.msk [vmem:[%s6] sm:$0xff] %vm2324, %v2293
  %2326 = vst.msk [vmem:[%s6 + $0x8] sm:$0xff] %vm2324, %v2295
  %2327 = vst.msk [vmem:[%s6 + $0x10] sm:$0xff] %vm2324, %v2297
  %2328 = vst.msk [vmem:[%s6 + $0x18] sm:$0xff] %vm2324, %v2299
  %2329 = vst.msk [vmem:[%s6 + $0x20] sm:$0xff] %vm2324, %v2301
  %2330 = vst.msk [vmem:[%s6 + $0x28] sm:$0xff] %vm2324, %v2303
  %2331 = vst.msk [vmem:[%s6 + $0x30] sm:$0xff] %vm2324, %v2305
  %2332 = vst.msk [vmem:[%s6 + $0x38] sm:$0xff] %vm2324, %v2307
  %2333 = vst.msk [vmem:[%s6 + $0x40] sm:$0xff] %vm2324, %v2309
  %2334 = vst.msk [vmem:[%s6 + $0x48] sm:$0xff] %vm2324, %v2311
  %2335 = vst.msk [vmem:[%s6 + $0x50] sm:$0xff] %vm2324, %v2313
  %2336 = vst.msk [vmem:[%s6 + $0x58] sm:$0xff] %vm2324, %v2315
  %2337 = vst.msk [vmem:[%s6 + $0x60] sm:$0xff] %vm2324, %v2317
  %2338 = vst.msk [vmem:[%s6 + $0x68] sm:$0xff] %vm2324, %v2319
  %2339 = vst.msk [vmem:[%s6 + $0x70] sm:$0xff] %vm2324, %v2321
  %2340 = vst.msk [vmem:[%s6 + $0x78] sm:$0xff] %vm2324, %v2323
  // Predicated region
  $region26: #{tpu_custom_call.1} parent=0 // pred_check
    _
  $region27: #{tpu_custom_call.1} parent=0 // pred_check_branch
    %2342 = sbr.rel (0) target = $region29
  $region28: #{tpu_custom_call.1} parent=0 // pred_region
    _
  $region29: #{tpu_custom_call.1} parent=0 // pred_fallthru
    _
  // Predicated region
  $region30: #{tpu_custom_call.1} parent=0 // pred_check
    _
  $region31: #{tpu_custom_call.1} parent=0 // pred_check_branch
    %2344 = sbr.rel (0) target = $region33
  $region32: #{tpu_custom_call.1} parent=0 // pred_region
    _
  $region33: #{tpu_custom_call.1} parent=0 // pred_fallthru
    _

</llo_original>
